<compile_context>
chip_gen: v6e
topology: v6e:2x2x1
jax: 0.10.0
libtpu: 0.0.40
codegen_flags: <defaults>
</compile_context>

<pallas_src>
import functools

import jax
import jax.numpy as jnp
from jax.experimental import pallas as pl
from jax.experimental.pallas import tpu as pltpu


def _corr_kernel(fm1_ref, fm2_ref, out_ref, fm2p_ref, *, C, H, W, D):
    """One program per batch element.

    fm1_ref:  (1, C, L)        L = H*W (spatial flattened onto the lane axis)
    fm2_ref:  (1, C, L)
    out_ref:  (1, K, L)        K = (2D+1)**2, dy-major / dx-minor
    fm2p_ref: (C, L + 2*pad)   VMEM scratch: zero-padded flat copy of fm2
    """
    L = H * W
    S = 2 * D + 1
    pad = D * (W + 1)            # flat offset of displacement (-D, -D)
    Lpad = L + 2 * pad

    # Build the zero-padded flat fm2 once per batch, entirely in VMEM
    # (no HBM round trip for a padded copy).
    fm2p_ref[...] = jnp.zeros((C, Lpad), dtype=fm2p_ref.dtype)
    fm2p_ref[:, pl.ds(pad, L)] = fm2_ref[0]

    a = fm1_ref[0].astype(jnp.float32)                       # (C, L), lane-dense

    # Column index x = p mod W of every flattened pixel; used to mask columns
    # that wrap across row boundaries for horizontal displacements.  The S
    # distinct masks are hoisted out of the displacement loop.
    col = jax.lax.broadcasted_iota(jnp.int32, (1, L), 1) % W
    x_masks = {dx: jnp.logical_and(col >= -dx, col < W - dx)
               for dx in range(-D, D + 1)}

    # Statically unrolled loop over all K displacements (dy-major, dx-minor),
    # matching the PyTorch nested-loop ordering.
    # TODO(synk): for large max_displacement (K ~ 1681) and large H*W, tile K
    # and the spatial axis (halo rows on fm2) instead of whole-image blocks
    # with a fully unrolled K loop.
    for k in range(S * S):
        dy = k // S - D
        dx = k % S - D
        off = pad + dy * W + dx                               # static, >= 0
        b = fm2p_ref[:, pl.ds(off, L)].astype(jnp.float32)    # (C, L) shifted window
        corr = jnp.sum(a * b, axis=0, keepdims=True)          # (1, L) f32 accumulate
        corr = jnp.where(x_masks[dx], corr, 0.0)              # zero out-of-image columns
        out_ref[0, pl.ds(k, 1), :] = corr.astype(out_ref.dtype)


def correlation_layer(fm1_nchw, fm2_nchw, max_displacement=2):
    """Pallas implementation of CorrelationLayer.forward.

    Args:
      fm1_nchw, fm2_nchw: (N, C, H, W) feature maps (PyTorch convention).
    Returns:
      (N, 1, H, W, (2*max_displacement+1)**2) correlation volume.
    """
    N, C, H, W = fm1_nchw.shape
    D = max_displacement
    S = 2 * D + 1
    K = S * S
    L = H * W
    pad = D * (W + 1)

    # Free layout glue: keep NCHW, flatten spatial (contiguous reshape, no copy).
    fm1_flat = fm1_nchw.reshape(N, C, L)
    fm2_flat = fm2_nchw.reshape(N, C, L)

    kernel = functools.partial(_corr_kernel, C=C, H=H, W=W, D=D)

    out_nkl = pl.pallas_call(
        kernel,
        out_shape=jax.ShapeDtypeStruct((N, K, L), fm1_nchw.dtype),
        grid_spec=pltpu.PrefetchScalarGridSpec(
            num_scalar_prefetch=0,
            grid=(N,),
            in_specs=[
                pl.BlockSpec((1, C, L), lambda n: (n, 0, 0)),
                pl.BlockSpec((1, C, L), lambda n: (n, 0, 0)),
            ],
            out_specs=pl.BlockSpec((1, K, L), lambda n: (n, 0, 0)),
            scratch_shapes=[pltpu.VMEM((C, L + 2 * pad), fm2_nchw.dtype)],
        ),
        compiler_params=pltpu.CompilerParams(
            dimension_semantics=("parallel",),
            vmem_limit_bytes=32 * 1024 * 1024,
        ),
    )(fm1_flat, fm2_flat)

    # (N, K, L) -> (N, K, H, W) -> (N, H, W, K) -> (N, 1, H, W, K)
    # (the final permute is part of the module's semantics, as in PyTorch).
    out = out_nkl.reshape(N, K, H, W)
    return jnp.transpose(out, (0, 2, 3, 1))[:, None]


def correlation_layer_reference(fm1, fm2, max_displacement=2):
    """Pure-JAX reference mirroring the PyTorch loop, for verification."""
    N, C, H, W = fm1.shape
    D = max_displacement
    fm2p = jnp.pad(fm2, ((0, 0), (0, 0), (D, D), (D, D)))
    maps = []
    for dy in range(-D, D + 1):
        for dx in range(-D, D + 1):
            shifted = fm2p[:, :, D + dy:D + dy + H, D + dx:D + dx + W]
            maps.append(jnp.sum(fm1 * shifted, axis=1, keepdims=True))
    vol = jnp.concatenate(maps, axis=1)                  # (N, K, H, W)
    return jnp.transpose(vol, (0, 2, 3, 1))[:, None]     # (N, 1, H, W, K)


if __name__ == "__main__":
    # CorrelationLayer has no learned parameters; it is purely functional.
    N, C, H, W = 2, 4, 16, 16
    MAX_DISP = 2  # keeps K = 25 small for the example (module default is 20)

    key = jax.random.PRNGKey(0)
    k1, k2 = jax.random.split(key)
    fm1 = jax.random.normal(k1, (N, C, H, W), dtype=jnp.float32)
    fm2 = jax.random.normal(k2, (N, C, H, W), dtype=jnp.float32)

    out = correlation_layer(fm1, fm2, max_displacement=MAX_DISP)
    out = jax.block_until_ready(out)

    expected_shape = (N, 1, H, W, (2 * MAX_DISP + 1) ** 2)
    assert out.shape == expected_shape, (out.shape, expected_shape)

    ref = jax.block_until_ready(
        correlation_layer_reference(fm1, fm2, max_displacement=MAX_DISP))
    assert jnp.allclose(out, ref, atol=1e-5, rtol=1e-5), "mismatch vs reference"

    print("KERNEL_OK")
</pallas_src>

<mosaic_0001>
module attributes {stable_mosaic.version = 11 : i64} {
  func.func @_corr_kernel(%arg0: i32, %arg1: memref<1x4x256xf32, #tpu.memory_space<vmem>>, %arg2: memref<1x4x256xf32, #tpu.memory_space<vmem>>, %arg3: memref<1x25x256xf32, #tpu.memory_space<vmem>>, %arg4: memref<4x324xf32, #tpu.memory_space<vmem>>) attributes {dimension_semantics = [#tpu.dimension_semantics<parallel>], iteration_bounds = array<i64: 2>, scalar_prefetch = 0 : i64, scratch_operands = 1 : i64, tpu.core_type = #tpu.core_type<tc>, window_params = [{transform_indices = @transform_0, window_bounds = array<i64: 1, 4, 256>}, {transform_indices = @transform_1, window_bounds = array<i64: 1, 4, 256>}, {transform_indices = @transform_2, window_bounds = array<i64: 1, 25, 256>}]} {
    %cst = arith.constant 0.000000e+00 : f32
    %0 = vector.broadcast %cst : f32 to vector<4x324xf32>
    %c0 = arith.constant 0 : index
    %c0_0 = arith.constant 0 : index
    %1 = vector.load %arg4[%c0, %c0_0] : memref<4x324xf32, #tpu.memory_space<vmem>>, vector<4x324xf32>
    tpu.vector_store %arg4[%c0, %c0_0], %0 {strides = array<i32>} : memref<4x324xf32, #tpu.memory_space<vmem>>, vector<4x324xf32>,
    %c0_1 = arith.constant 0 : index
    %c0_2 = arith.constant 0 : index
    %c0_3 = arith.constant 0 : index
    %2 = vector.load %arg2[%c0_1, %c0_2, %c0_3] : memref<1x4x256xf32, #tpu.memory_space<vmem>>, vector<1x4x256xf32>
    %3 = vector.shape_cast %2 : vector<1x4x256xf32> to vector<4x256xf32>
    %c0_4 = arith.constant 0 : index
    %c34 = arith.constant 34 : index
    %4 = vector.load %arg4[%c0_4, %c34] : memref<4x324xf32, #tpu.memory_space<vmem>>, vector<4x256xf32>
    tpu.vector_store %arg4[%c0_4, %c34], %3 {strides = array<i32>} : memref<4x324xf32, #tpu.memory_space<vmem>>, vector<4x256xf32>,
    %c0_5 = arith.constant 0 : index
    %c0_6 = arith.constant 0 : index
    %c0_7 = arith.constant 0 : index
    %5 = vector.load %arg1[%c0_5, %c0_6, %c0_7] : memref<1x4x256xf32, #tpu.memory_space<vmem>>, vector<1x4x256xf32>
    %6 = vector.shape_cast %5 : vector<1x4x256xf32> to vector<4x256xf32>
    %7 = tpu.iota {dimensions = array<i32: 1>} : vector<1x256xi32>
    %c16_i32 = arith.constant 16 : i32
    %c0_i32 = arith.constant 0 : i32
    %8 = arith.cmpi eq, %c16_i32, %c0_i32 : i32
    %c1_i32 = arith.constant 1 : i32
    %9 = arith.select %8, %c1_i32, %c16_i32 : i32
    %10 = vector.broadcast %9 : i32 to vector<1x256xi32>
    %11 = arith.remsi %7, %10 : vector<1x256xi32>
    %c0_i32_8 = arith.constant 0 : i32
    %12 = vector.broadcast %c0_i32_8 : i32 to vector<1x256xi32>
    %13 = arith.cmpi ne, %11, %12 : vector<1x256xi32>
    %c0_i32_9 = arith.constant 0 : i32
    %14 = vector.broadcast %c0_i32_9 : i32 to vector<1x256xi32>
    %15 = arith.cmpi slt, %11, %14 : vector<1x256xi32>
    %c0_i32_10 = arith.constant 0 : i32
    %16 = arith.cmpi slt, %9, %c0_i32_10 : i32
    %17 = vector.broadcast %16 : i1 to vector<1x256xi1>
    %18 = vector.broadcast %17 : vector<1x256xi1> to vector<1x256xi1>
    %19 = arith.xori %15, %18 : vector<1x256xi1>
    %20 = arith.andi %19, %13 : vector<1x256xi1>
    %21 = vector.broadcast %9 : i32 to vector<1x256xi32>
    %22 = arith.addi %11, %21 : vector<1x256xi32>
    %23 = arith.select %20, %22, %11 : vector<1x256xi1>, vector<1x256xi32>
    %c2_i32 = arith.constant 2 : i32
    %24 = vector.broadcast %c2_i32 : i32 to vector<1x256xi32>
    %25 = arith.cmpi sge, %23, %24 : vector<1x256xi32>
    %c18_i32 = arith.constant 18 : i32
    %26 = vector.broadcast %c18_i32 : i32 to vector<1x256xi32>
    %27 = arith.cmpi slt, %23, %26 : vector<1x256xi32>
    %28 = arith.andi %25, %27 : vector<1x256xi1>
    %c1_i32_11 = arith.constant 1 : i32
    %29 = vector.broadcast %c1_i32_11 : i32 to vector<1x256xi32>
    %30 = arith.cmpi sge, %23, %29 : vector<1x256xi32>
    %c17_i32 = arith.constant 17 : i32
    %31 = vector.broadcast %c17_i32 : i32 to vector<1x256xi32>
    %32 = arith.cmpi slt, %23, %31 : vector<1x256xi32>
    %33 = arith.andi %30, %32 : vector<1x256xi1>
    %c0_i32_12 = arith.constant 0 : i32
    %34 = vector.broadcast %c0_i32_12 : i32 to vector<1x256xi32>
    %35 = arith.cmpi sge, %23, %34 : vector<1x256xi32>
    %c16_i32_13 = arith.constant 16 : i32
    %36 = vector.broadcast %c16_i32_13 : i32 to vector<1x256xi32>
    %37 = arith.cmpi slt, %23, %36 : vector<1x256xi32>
    %38 = arith.andi %35, %37 : vector<1x256xi1>
    %c-1_i32 = arith.constant -1 : i32
    %39 = vector.broadcast %c-1_i32 : i32 to vector<1x256xi32>
    %40 = arith.cmpi sge, %23, %39 : vector<1x256xi32>
    %c15_i32 = arith.constant 15 : i32
    %41 = vector.broadcast %c15_i32 : i32 to vector<1x256xi32>
    %42 = arith.cmpi slt, %23, %41 : vector<1x256xi32>
    %43 = arith.andi %40, %42 : vector<1x256xi1>
    %c-2_i32 = arith.constant -2 : i32
    %44 = vector.broadcast %c-2_i32 : i32 to vector<1x256xi32>
    %45 = arith.cmpi sge, %23, %44 : vector<1x256xi32>
    %c14_i32 = arith.constant 14 : i32
    %46 = vector.broadcast %c14_i32 : i32 to vector<1x256xi32>
    %47 = arith.cmpi slt, %23, %46 : vector<1x256xi32>
    %48 = arith.andi %45, %47 : vector<1x256xi1>
    %c0_14 = arith.constant 0 : index
    %c0_15 = arith.constant 0 : index
    %49 = vector.load %arg4[%c0_14, %c0_15] : memref<4x324xf32, #tpu.memory_space<vmem>>, vector<4x256xf32>
    %50 = arith.mulf %6, %49 : vector<4x256xf32>
    %cst_16 = arith.constant dense<0.000000e+00> : vector<256xf32>
    %51 = vector.multi_reduction <add>, %50, %cst_16 [0] : vector<4x256xf32> to vector<256xf32>
    %52 = vector.shape_cast %51 : vector<256xf32> to vector<1x256xf32>
    %cst_17 = arith.constant 0.000000e+00 : f32
    %53 = vector.broadcast %cst_17 : f32 to vector<1x256xf32>
    %54 = arith.select %28, %52, %53 : vector<1x256xi1>, vector<1x256xf32>
    %c0_18 = arith.constant 0 : index
    %c0_19 = arith.constant 0 : index
    %c0_20 = arith.constant 0 : index
    %55 = vector.load %arg3[%c0_18, %c0_19, %c0_20] : memref<1x25x256xf32, #tpu.memory_space<vmem>>, vector<1x1x256xf32>
    %56 = vector.shape_cast %55 : vector<1x1x256xf32> to vector<1x256xf32>
    %57 = vector.shape_cast %54 : vector<1x256xf32> to vector<1x1x256xf32>
    tpu.vector_store %arg3[%c0_18, %c0_19, %c0_20], %57 {strides = array<i32>} : memref<1x25x256xf32, #tpu.memory_space<vmem>>, vector<1x1x256xf32>,
    %c0_21 = arith.constant 0 : index
    %c1 = arith.constant 1 : index
    %58 = vector.load %arg4[%c0_21, %c1] : memref<4x324xf32, #tpu.memory_space<vmem>>, vector<4x256xf32>
    %59 = arith.mulf %6, %58 : vector<4x256xf32>
    %cst_22 = arith.constant dense<0.000000e+00> : vector<256xf32>
    %60 = vector.multi_reduction <add>, %59, %cst_22 [0] : vector<4x256xf32> to vector<256xf32>
    %61 = vector.shape_cast %60 : vector<256xf32> to vector<1x256xf32>
    %cst_23 = arith.constant 0.000000e+00 : f32
    %62 = vector.broadcast %cst_23 : f32 to vector<1x256xf32>
    %63 = arith.select %33, %61, %62 : vector<1x256xi1>, vector<1x256xf32>
    %c0_24 = arith.constant 0 : index
    %c1_25 = arith.constant 1 : index
    %c0_26 = arith.constant 0 : index
    %64 = vector.load %arg3[%c0_24, %c1_25, %c0_26] : memref<1x25x256xf32, #tpu.memory_space<vmem>>, vector<1x1x256xf32>
    %65 = vector.shape_cast %64 : vector<1x1x256xf32> to vector<1x256xf32>
    %66 = vector.shape_cast %63 : vector<1x256xf32> to vector<1x1x256xf32>
    tpu.vector_store %arg3[%c0_24, %c1_25, %c0_26], %66 {strides = array<i32>} : memref<1x25x256xf32, #tpu.memory_space<vmem>>, vector<1x1x256xf32>,
    %c0_27 = arith.constant 0 : index
    %c2 = arith.constant 2 : index
    %67 = vector.load %arg4[%c0_27, %c2] : memref<4x324xf32, #tpu.memory_space<vmem>>, vector<4x256xf32>
    %68 = arith.mulf %6, %67 : vector<4x256xf32>
    %cst_28 = arith.constant dense<0.000000e+00> : vector<256xf32>
    %69 = vector.multi_reduction <add>, %68, %cst_28 [0] : vector<4x256xf32> to vector<256xf32>
    %70 = vector.shape_cast %69 : vector<256xf32> to vector<1x256xf32>
    %cst_29 = arith.constant 0.000000e+00 : f32
    %71 = vector.broadcast %cst_29 : f32 to vector<1x256xf32>
    %72 = arith.select %38, %70, %71 : vector<1x256xi1>, vector<1x256xf32>
    %c0_30 = arith.constant 0 : index
    %c2_31 = arith.constant 2 : index
    %c0_32 = arith.constant 0 : index
    %73 = vector.load %arg3[%c0_30, %c2_31, %c0_32] : memref<1x25x256xf32, #tpu.memory_space<vmem>>, vector<1x1x256xf32>
    %74 = vector.shape_cast %73 : vector<1x1x256xf32> to vector<1x256xf32>
    %75 = vector.shape_cast %72 : vector<1x256xf32> to vector<1x1x256xf32>
    tpu.vector_store %arg3[%c0_30, %c2_31, %c0_32], %75 {strides = array<i32>} : memref<1x25x256xf32, #tpu.memory_space<vmem>>, vector<1x1x256xf32>,
    %c0_33 = arith.constant 0 : index
    %c3 = arith.constant 3 : index
    %76 = vector.load %arg4[%c0_33, %c3] : memref<4x324xf32, #tpu.memory_space<vmem>>, vector<4x256xf32>
    %77 = arith.mulf %6, %76 : vector<4x256xf32>
    %cst_34 = arith.constant dense<0.000000e+00> : vector<256xf32>
    %78 = vector.multi_reduction <add>, %77, %cst_34 [0] : vector<4x256xf32> to vector<256xf32>
    %79 = vector.shape_cast %78 : vector<256xf32> to vector<1x256xf32>
    %cst_35 = arith.constant 0.000000e+00 : f32
    %80 = vector.broadcast %cst_35 : f32 to vector<1x256xf32>
    %81 = arith.select %43, %79, %80 : vector<1x256xi1>, vector<1x256xf32>
    %c0_36 = arith.constant 0 : index
    %c3_37 = arith.constant 3 : index
    %c0_38 = arith.constant 0 : index
    %82 = vector.load %arg3[%c0_36, %c3_37, %c0_38] : memref<1x25x256xf32, #tpu.memory_space<vmem>>, vector<1x1x256xf32>
    %83 = vector.shape_cast %82 : vector<1x1x256xf32> to vector<1x256xf32>
    %84 = vector.shape_cast %81 : vector<1x256xf32> to vector<1x1x256xf32>
    tpu.vector_store %arg3[%c0_36, %c3_37, %c0_38], %84 {strides = array<i32>} : memref<1x25x256xf32, #tpu.memory_space<vmem>>, vector<1x1x256xf32>,
    %c0_39 = arith.constant 0 : index
    %c4 = arith.constant 4 : index
    %85 = vector.load %arg4[%c0_39, %c4] : memref<4x324xf32, #tpu.memory_space<vmem>>, vector<4x256xf32>
    %86 = arith.mulf %6, %85 : vector<4x256xf32>
    %cst_40 = arith.constant dense<0.000000e+00> : vector<256xf32>
    %87 = vector.multi_reduction <add>, %86, %cst_40 [0] : vector<4x256xf32> to vector<256xf32>
    %88 = vector.shape_cast %87 : vector<256xf32> to vector<1x256xf32>
    %cst_41 = arith.constant 0.000000e+00 : f32
    %89 = vector.broadcast %cst_41 : f32 to vector<1x256xf32>
    %90 = arith.select %48, %88, %89 : vector<1x256xi1>, vector<1x256xf32>
    %c0_42 = arith.constant 0 : index
    %c4_43 = arith.constant 4 : index
    %c0_44 = arith.constant 0 : index
    %91 = vector.load %arg3[%c0_42, %c4_43, %c0_44] : memref<1x25x256xf32, #tpu.memory_space<vmem>>, vector<1x1x256xf32>
    %92 = vector.shape_cast %91 : vector<1x1x256xf32> to vector<1x256xf32>
    %93 = vector.shape_cast %90 : vector<1x256xf32> to vector<1x1x256xf32>
    tpu.vector_store %arg3[%c0_42, %c4_43, %c0_44], %93 {strides = array<i32>} : memref<1x25x256xf32, #tpu.memory_space<vmem>>, vector<1x1x256xf32>,
    %c0_45 = arith.constant 0 : index
    %c16 = arith.constant 16 : index
    %94 = vector.load %arg4[%c0_45, %c16] : memref<4x324xf32, #tpu.memory_space<vmem>>, vector<4x256xf32>
    %95 = arith.mulf %6, %94 : vector<4x256xf32>
    %cst_46 = arith.constant dense<0.000000e+00> : vector<256xf32>
    %96 = vector.multi_reduction <add>, %95, %cst_46 [0] : vector<4x256xf32> to vector<256xf32>
    %97 = vector.shape_cast %96 : vector<256xf32> to vector<1x256xf32>
    %cst_47 = arith.constant 0.000000e+00 : f32
    %98 = vector.broadcast %cst_47 : f32 to vector<1x256xf32>
    %99 = arith.select %28, %97, %98 : vector<1x256xi1>, vector<1x256xf32>
    %c0_48 = arith.constant 0 : index
    %c5 = arith.constant 5 : index
    %c0_49 = arith.constant 0 : index
    %100 = vector.load %arg3[%c0_48, %c5, %c0_49] : memref<1x25x256xf32, #tpu.memory_space<vmem>>, vector<1x1x256xf32>
    %101 = vector.shape_cast %100 : vector<1x1x256xf32> to vector<1x256xf32>
    %102 = vector.shape_cast %99 : vector<1x256xf32> to vector<1x1x256xf32>
    tpu.vector_store %arg3[%c0_48, %c5, %c0_49], %102 {strides = array<i32>} : memref<1x25x256xf32, #tpu.memory_space<vmem>>, vector<1x1x256xf32>,
    %c0_50 = arith.constant 0 : index
    %c17 = arith.constant 17 : index
    %103 = vector.load %arg4[%c0_50, %c17] : memref<4x324xf32, #tpu.memory_space<vmem>>, vector<4x256xf32>
    %104 = arith.mulf %6, %103 : vector<4x256xf32>
    %cst_51 = arith.constant dense<0.000000e+00> : vector<256xf32>
    %105 = vector.multi_reduction <add>, %104, %cst_51 [0] : vector<4x256xf32> to vector<256xf32>
    %106 = vector.shape_cast %105 : vector<256xf32> to vector<1x256xf32>
    %cst_52 = arith.constant 0.000000e+00 : f32
    %107 = vector.broadcast %cst_52 : f32 to vector<1x256xf32>
    %108 = arith.select %33, %106, %107 : vector<1x256xi1>, vector<1x256xf32>
    %c0_53 = arith.constant 0 : index
    %c6 = arith.constant 6 : index
    %c0_54 = arith.constant 0 : index
    %109 = vector.load %arg3[%c0_53, %c6, %c0_54] : memref<1x25x256xf32, #tpu.memory_space<vmem>>, vector<1x1x256xf32>
    %110 = vector.shape_cast %109 : vector<1x1x256xf32> to vector<1x256xf32>
    %111 = vector.shape_cast %108 : vector<1x256xf32> to vector<1x1x256xf32>
    tpu.vector_store %arg3[%c0_53, %c6, %c0_54], %111 {strides = array<i32>} : memref<1x25x256xf32, #tpu.memory_space<vmem>>, vector<1x1x256xf32>,
    %c0_55 = arith.constant 0 : index
    %c18 = arith.constant 18 : index
    %112 = vector.load %arg4[%c0_55, %c18] : memref<4x324xf32, #tpu.memory_space<vmem>>, vector<4x256xf32>
    %113 = arith.mulf %6, %112 : vector<4x256xf32>
    %cst_56 = arith.constant dense<0.000000e+00> : vector<256xf32>
    %114 = vector.multi_reduction <add>, %113, %cst_56 [0] : vector<4x256xf32> to vector<256xf32>
    %115 = vector.shape_cast %114 : vector<256xf32> to vector<1x256xf32>
    %cst_57 = arith.constant 0.000000e+00 : f32
    %116 = vector.broadcast %cst_57 : f32 to vector<1x256xf32>
    %117 = arith.select %38, %115, %116 : vector<1x256xi1>, vector<1x256xf32>
    %c0_58 = arith.constant 0 : index
    %c7 = arith.constant 7 : index
    %c0_59 = arith.constant 0 : index
    %118 = vector.load %arg3[%c0_58, %c7, %c0_59] : memref<1x25x256xf32, #tpu.memory_space<vmem>>, vector<1x1x256xf32>
    %119 = vector.shape_cast %118 : vector<1x1x256xf32> to vector<1x256xf32>
    %120 = vector.shape_cast %117 : vector<1x256xf32> to vector<1x1x256xf32>
    tpu.vector_store %arg3[%c0_58, %c7, %c0_59], %120 {strides = array<i32>} : memref<1x25x256xf32, #tpu.memory_space<vmem>>, vector<1x1x256xf32>,
    %c0_60 = arith.constant 0 : index
    %c19 = arith.constant 19 : index
    %121 = vector.load %arg4[%c0_60, %c19] : memref<4x324xf32, #tpu.memory_space<vmem>>, vector<4x256xf32>
    %122 = arith.mulf %6, %121 : vector<4x256xf32>
    %cst_61 = arith.constant dense<0.000000e+00> : vector<256xf32>
    %123 = vector.multi_reduction <add>, %122, %cst_61 [0] : vector<4x256xf32> to vector<256xf32>
    %124 = vector.shape_cast %123 : vector<256xf32> to vector<1x256xf32>
    %cst_62 = arith.constant 0.000000e+00 : f32
    %125 = vector.broadcast %cst_62 : f32 to vector<1x256xf32>
    %126 = arith.select %43, %124, %125 : vector<1x256xi1>, vector<1x256xf32>
    %c0_63 = arith.constant 0 : index
    %c8 = arith.constant 8 : index
    %c0_64 = arith.constant 0 : index
    %127 = vector.load %arg3[%c0_63, %c8, %c0_64] : memref<1x25x256xf32, #tpu.memory_space<vmem>>, vector<1x1x256xf32>
    %128 = vector.shape_cast %127 : vector<1x1x256xf32> to vector<1x256xf32>
    %129 = vector.shape_cast %126 : vector<1x256xf32> to vector<1x1x256xf32>
    tpu.vector_store %arg3[%c0_63, %c8, %c0_64], %129 {strides = array<i32>} : memref<1x25x256xf32, #tpu.memory_space<vmem>>, vector<1x1x256xf32>,
    %c0_65 = arith.constant 0 : index
    %c20 = arith.constant 20 : index
    %130 = vector.load %arg4[%c0_65, %c20] : memref<4x324xf32, #tpu.memory_space<vmem>>, vector<4x256xf32>
    %131 = arith.mulf %6, %130 : vector<4x256xf32>
    %cst_66 = arith.constant dense<0.000000e+00> : vector<256xf32>
    %132 = vector.multi_reduction <add>, %131, %cst_66 [0] : vector<4x256xf32> to vector<256xf32>
    %133 = vector.shape_cast %132 : vector<256xf32> to vector<1x256xf32>
    %cst_67 = arith.constant 0.000000e+00 : f32
    %134 = vector.broadcast %cst_67 : f32 to vector<1x256xf32>
    %135 = arith.select %48, %133, %134 : vector<1x256xi1>, vector<1x256xf32>
    %c0_68 = arith.constant 0 : index
    %c9 = arith.constant 9 : index
    %c0_69 = arith.constant 0 : index
    %136 = vector.load %arg3[%c0_68, %c9, %c0_69] : memref<1x25x256xf32, #tpu.memory_space<vmem>>, vector<1x1x256xf32>
    %137 = vector.shape_cast %136 : vector<1x1x256xf32> to vector<1x256xf32>
    %138 = vector.shape_cast %135 : vector<1x256xf32> to vector<1x1x256xf32>
    tpu.vector_store %arg3[%c0_68, %c9, %c0_69], %138 {strides = array<i32>} : memref<1x25x256xf32, #tpu.memory_space<vmem>>, vector<1x1x256xf32>,
    %c0_70 = arith.constant 0 : index
    %c32 = arith.constant 32 : index
    %139 = vector.load %arg4[%c0_70, %c32] : memref<4x324xf32, #tpu.memory_space<vmem>>, vector<4x256xf32>
    %140 = arith.mulf %6, %139 : vector<4x256xf32>
    %cst_71 = arith.constant dense<0.000000e+00> : vector<256xf32>
    %141 = vector.multi_reduction <add>, %140, %cst_71 [0] : vector<4x256xf32> to vector<256xf32>
    %142 = vector.shape_cast %141 : vector<256xf32> to vector<1x256xf32>
    %cst_72 = arith.constant 0.000000e+00 : f32
    %143 = vector.broadcast %cst_72 : f32 to vector<1x256xf32>
    %144 = arith.select %28, %142, %143 : vector<1x256xi1>, vector<1x256xf32>
    %c0_73 = arith.constant 0 : index
    %c10 = arith.constant 10 : index
    %c0_74 = arith.constant 0 : index
    %145 = vector.load %arg3[%c0_73, %c10, %c0_74] : memref<1x25x256xf32, #tpu.memory_space<vmem>>, vector<1x1x256xf32>
    %146 = vector.shape_cast %145 : vector<1x1x256xf32> to vector<1x256xf32>
    %147 = vector.shape_cast %144 : vector<1x256xf32> to vector<1x1x256xf32>
    tpu.vector_store %arg3[%c0_73, %c10, %c0_74], %147 {strides = array<i32>} : memref<1x25x256xf32, #tpu.memory_space<vmem>>, vector<1x1x256xf32>,
    %c0_75 = arith.constant 0 : index
    %c33 = arith.constant 33 : index
    %148 = vector.load %arg4[%c0_75, %c33] : memref<4x324xf32, #tpu.memory_space<vmem>>, vector<4x256xf32>
    %149 = arith.mulf %6, %148 : vector<4x256xf32>
    %cst_76 = arith.constant dense<0.000000e+00> : vector<256xf32>
    %150 = vector.multi_reduction <add>, %149, %cst_76 [0] : vector<4x256xf32> to vector<256xf32>
    %151 = vector.shape_cast %150 : vector<256xf32> to vector<1x256xf32>
    %cst_77 = arith.constant 0.000000e+00 : f32
    %152 = vector.broadcast %cst_77 : f32 to vector<1x256xf32>
    %153 = arith.select %33, %151, %152 : vector<1x256xi1>, vector<1x256xf32>
    %c0_78 = arith.constant 0 : index
    %c11 = arith.constant 11 : index
    %c0_79 = arith.constant 0 : index
    %154 = vector.load %arg3[%c0_78, %c11, %c0_79] : memref<1x25x256xf32, #tpu.memory_space<vmem>>, vector<1x1x256xf32>
    %155 = vector.shape_cast %154 : vector<1x1x256xf32> to vector<1x256xf32>
    %156 = vector.shape_cast %153 : vector<1x256xf32> to vector<1x1x256xf32>
    tpu.vector_store %arg3[%c0_78, %c11, %c0_79], %156 {strides = array<i32>} : memref<1x25x256xf32, #tpu.memory_space<vmem>>, vector<1x1x256xf32>,
    %c0_80 = arith.constant 0 : index
    %c34_81 = arith.constant 34 : index
    %157 = vector.load %arg4[%c0_80, %c34_81] : memref<4x324xf32, #tpu.memory_space<vmem>>, vector<4x256xf32>
    %158 = arith.mulf %6, %157 : vector<4x256xf32>
    %cst_82 = arith.constant dense<0.000000e+00> : vector<256xf32>
    %159 = vector.multi_reduction <add>, %158, %cst_82 [0] : vector<4x256xf32> to vector<256xf32>
    %160 = vector.shape_cast %159 : vector<256xf32> to vector<1x256xf32>
    %cst_83 = arith.constant 0.000000e+00 : f32
    %161 = vector.broadcast %cst_83 : f32 to vector<1x256xf32>
    %162 = arith.select %38, %160, %161 : vector<1x256xi1>, vector<1x256xf32>
    %c0_84 = arith.constant 0 : index
    %c12 = arith.constant 12 : index
    %c0_85 = arith.constant 0 : index
    %163 = vector.load %arg3[%c0_84, %c12, %c0_85] : memref<1x25x256xf32, #tpu.memory_space<vmem>>, vector<1x1x256xf32>
    %164 = vector.shape_cast %163 : vector<1x1x256xf32> to vector<1x256xf32>
    %165 = vector.shape_cast %162 : vector<1x256xf32> to vector<1x1x256xf32>
    tpu.vector_store %arg3[%c0_84, %c12, %c0_85], %165 {strides = array<i32>} : memref<1x25x256xf32, #tpu.memory_space<vmem>>, vector<1x1x256xf32>,
    %c0_86 = arith.constant 0 : index
    %c35 = arith.constant 35 : index
    %166 = vector.load %arg4[%c0_86, %c35] : memref<4x324xf32, #tpu.memory_space<vmem>>, vector<4x256xf32>
    %167 = arith.mulf %6, %166 : vector<4x256xf32>
    %cst_87 = arith.constant dense<0.000000e+00> : vector<256xf32>
    %168 = vector.multi_reduction <add>, %167, %cst_87 [0] : vector<4x256xf32> to vector<256xf32>
    %169 = vector.shape_cast %168 : vector<256xf32> to vector<1x256xf32>
    %cst_88 = arith.constant 0.000000e+00 : f32
    %170 = vector.broadcast %cst_88 : f32 to vector<1x256xf32>
    %171 = arith.select %43, %169, %170 : vector<1x256xi1>, vector<1x256xf32>
    %c0_89 = arith.constant 0 : index
    %c13 = arith.constant 13 : index
    %c0_90 = arith.constant 0 : index
    %172 = vector.load %arg3[%c0_89, %c13, %c0_90] : memref<1x25x256xf32, #tpu.memory_space<vmem>>, vector<1x1x256xf32>
    %173 = vector.shape_cast %172 : vector<1x1x256xf32> to vector<1x256xf32>
    %174 = vector.shape_cast %171 : vector<1x256xf32> to vector<1x1x256xf32>
    tpu.vector_store %arg3[%c0_89, %c13, %c0_90], %174 {strides = array<i32>} : memref<1x25x256xf32, #tpu.memory_space<vmem>>, vector<1x1x256xf32>,
    %c0_91 = arith.constant 0 : index
    %c36 = arith.constant 36 : index
    %175 = vector.load %arg4[%c0_91, %c36] : memref<4x324xf32, #tpu.memory_space<vmem>>, vector<4x256xf32>
    %176 = arith.mulf %6, %175 : vector<4x256xf32>
    %cst_92 = arith.constant dense<0.000000e+00> : vector<256xf32>
    %177 = vector.multi_reduction <add>, %176, %cst_92 [0] : vector<4x256xf32> to vector<256xf32>
    %178 = vector.shape_cast %177 : vector<256xf32> to vector<1x256xf32>
    %cst_93 = arith.constant 0.000000e+00 : f32
    %179 = vector.broadcast %cst_93 : f32 to vector<1x256xf32>
    %180 = arith.select %48, %178, %179 : vector<1x256xi1>, vector<1x256xf32>
    %c0_94 = arith.constant 0 : index
    %c14 = arith.constant 14 : index
    %c0_95 = arith.constant 0 : index
    %181 = vector.load %arg3[%c0_94, %c14, %c0_95] : memref<1x25x256xf32, #tpu.memory_space<vmem>>, vector<1x1x256xf32>
    %182 = vector.shape_cast %181 : vector<1x1x256xf32> to vector<1x256xf32>
    %183 = vector.shape_cast %180 : vector<1x256xf32> to vector<1x1x256xf32>
    tpu.vector_store %arg3[%c0_94, %c14, %c0_95], %183 {strides = array<i32>} : memref<1x25x256xf32, #tpu.memory_space<vmem>>, vector<1x1x256xf32>,
    %c0_96 = arith.constant 0 : index
    %c48 = arith.constant 48 : index
    %184 = vector.load %arg4[%c0_96, %c48] : memref<4x324xf32, #tpu.memory_space<vmem>>, vector<4x256xf32>
    %185 = arith.mulf %6, %184 : vector<4x256xf32>
    %cst_97 = arith.constant dense<0.000000e+00> : vector<256xf32>
    %186 = vector.multi_reduction <add>, %185, %cst_97 [0] : vector<4x256xf32> to vector<256xf32>
    %187 = vector.shape_cast %186 : vector<256xf32> to vector<1x256xf32>
    %cst_98 = arith.constant 0.000000e+00 : f32
    %188 = vector.broadcast %cst_98 : f32 to vector<1x256xf32>
    %189 = arith.select %28, %187, %188 : vector<1x256xi1>, vector<1x256xf32>
    %c0_99 = arith.constant 0 : index
    %c15 = arith.constant 15 : index
    %c0_100 = arith.constant 0 : index
    %190 = vector.load %arg3[%c0_99, %c15, %c0_100] : memref<1x25x256xf32, #tpu.memory_space<vmem>>, vector<1x1x256xf32>
    %191 = vector.shape_cast %190 : vector<1x1x256xf32> to vector<1x256xf32>
    %192 = vector.shape_cast %189 : vector<1x256xf32> to vector<1x1x256xf32>
    tpu.vector_store %arg3[%c0_99, %c15, %c0_100], %192 {strides = array<i32>} : memref<1x25x256xf32, #tpu.memory_space<vmem>>, vector<1x1x256xf32>,
    %c0_101 = arith.constant 0 : index
    %c49 = arith.constant 49 : index
    %193 = vector.load %arg4[%c0_101, %c49] : memref<4x324xf32, #tpu.memory_space<vmem>>, vector<4x256xf32>
    %194 = arith.mulf %6, %193 : vector<4x256xf32>
    %cst_102 = arith.constant dense<0.000000e+00> : vector<256xf32>
    %195 = vector.multi_reduction <add>, %194, %cst_102 [0] : vector<4x256xf32> to vector<256xf32>
    %196 = vector.shape_cast %195 : vector<256xf32> to vector<1x256xf32>
    %cst_103 = arith.constant 0.000000e+00 : f32
    %197 = vector.broadcast %cst_103 : f32 to vector<1x256xf32>
    %198 = arith.select %33, %196, %197 : vector<1x256xi1>, vector<1x256xf32>
    %c0_104 = arith.constant 0 : index
    %c16_105 = arith.constant 16 : index
    %c0_106 = arith.constant 0 : index
    %199 = vector.load %arg3[%c0_104, %c16_105, %c0_106] : memref<1x25x256xf32, #tpu.memory_space<vmem>>, vector<1x1x256xf32>
    %200 = vector.shape_cast %199 : vector<1x1x256xf32> to vector<1x256xf32>
    %201 = vector.shape_cast %198 : vector<1x256xf32> to vector<1x1x256xf32>
    tpu.vector_store %arg3[%c0_104, %c16_105, %c0_106], %201 {strides = array<i32>} : memref<1x25x256xf32, #tpu.memory_space<vmem>>, vector<1x1x256xf32>,
    %c0_107 = arith.constant 0 : index
    %c50 = arith.constant 50 : index
    %202 = vector.load %arg4[%c0_107, %c50] : memref<4x324xf32, #tpu.memory_space<vmem>>, vector<4x256xf32>
    %203 = arith.mulf %6, %202 : vector<4x256xf32>
    %cst_108 = arith.constant dense<0.000000e+00> : vector<256xf32>
    %204 = vector.multi_reduction <add>, %203, %cst_108 [0] : vector<4x256xf32> to vector<256xf32>
    %205 = vector.shape_cast %204 : vector<256xf32> to vector<1x256xf32>
    %cst_109 = arith.constant 0.000000e+00 : f32
    %206 = vector.broadcast %cst_109 : f32 to vector<1x256xf32>
    %207 = arith.select %38, %205, %206 : vector<1x256xi1>, vector<1x256xf32>
    %c0_110 = arith.constant 0 : index
    %c17_111 = arith.constant 17 : index
    %c0_112 = arith.constant 0 : index
    %208 = vector.load %arg3[%c0_110, %c17_111, %c0_112] : memref<1x25x256xf32, #tpu.memory_space<vmem>>, vector<1x1x256xf32>
    %209 = vector.shape_cast %208 : vector<1x1x256xf32> to vector<1x256xf32>
    %210 = vector.shape_cast %207 : vector<1x256xf32> to vector<1x1x256xf32>
    tpu.vector_store %arg3[%c0_110, %c17_111, %c0_112], %210 {strides = array<i32>} : memref<1x25x256xf32, #tpu.memory_space<vmem>>, vector<1x1x256xf32>,
    %c0_113 = arith.constant 0 : index
    %c51 = arith.constant 51 : index
    %211 = vector.load %arg4[%c0_113, %c51] : memref<4x324xf32, #tpu.memory_space<vmem>>, vector<4x256xf32>
    %212 = arith.mulf %6, %211 : vector<4x256xf32>
    %cst_114 = arith.constant dense<0.000000e+00> : vector<256xf32>
    %213 = vector.multi_reduction <add>, %212, %cst_114 [0] : vector<4x256xf32> to vector<256xf32>
    %214 = vector.shape_cast %213 : vector<256xf32> to vector<1x256xf32>
    %cst_115 = arith.constant 0.000000e+00 : f32
    %215 = vector.broadcast %cst_115 : f32 to vector<1x256xf32>
    %216 = arith.select %43, %214, %215 : vector<1x256xi1>, vector<1x256xf32>
    %c0_116 = arith.constant 0 : index
    %c18_117 = arith.constant 18 : index
    %c0_118 = arith.constant 0 : index
    %217 = vector.load %arg3[%c0_116, %c18_117, %c0_118] : memref<1x25x256xf32, #tpu.memory_space<vmem>>, vector<1x1x256xf32>
    %218 = vector.shape_cast %217 : vector<1x1x256xf32> to vector<1x256xf32>
    %219 = vector.shape_cast %216 : vector<1x256xf32> to vector<1x1x256xf32>
    tpu.vector_store %arg3[%c0_116, %c18_117, %c0_118], %219 {strides = array<i32>} : memref<1x25x256xf32, #tpu.memory_space<vmem>>, vector<1x1x256xf32>,
    %c0_119 = arith.constant 0 : index
    %c52 = arith.constant 52 : index
    %220 = vector.load %arg4[%c0_119, %c52] : memref<4x324xf32, #tpu.memory_space<vmem>>, vector<4x256xf32>
    %221 = arith.mulf %6, %220 : vector<4x256xf32>
    %cst_120 = arith.constant dense<0.000000e+00> : vector<256xf32>
    %222 = vector.multi_reduction <add>, %221, %cst_120 [0] : vector<4x256xf32> to vector<256xf32>
    %223 = vector.shape_cast %222 : vector<256xf32> to vector<1x256xf32>
    %cst_121 = arith.constant 0.000000e+00 : f32
    %224 = vector.broadcast %cst_121 : f32 to vector<1x256xf32>
    %225 = arith.select %48, %223, %224 : vector<1x256xi1>, vector<1x256xf32>
    %c0_122 = arith.constant 0 : index
    %c19_123 = arith.constant 19 : index
    %c0_124 = arith.constant 0 : index
    %226 = vector.load %arg3[%c0_122, %c19_123, %c0_124] : memref<1x25x256xf32, #tpu.memory_space<vmem>>, vector<1x1x256xf32>
    %227 = vector.shape_cast %226 : vector<1x1x256xf32> to vector<1x256xf32>
    %228 = vector.shape_cast %225 : vector<1x256xf32> to vector<1x1x256xf32>
    tpu.vector_store %arg3[%c0_122, %c19_123, %c0_124], %228 {strides = array<i32>} : memref<1x25x256xf32, #tpu.memory_space<vmem>>, vector<1x1x256xf32>,
    %c0_125 = arith.constant 0 : index
    %c64 = arith.constant 64 : index
    %229 = vector.load %arg4[%c0_125, %c64] : memref<4x324xf32, #tpu.memory_space<vmem>>, vector<4x256xf32>
    %230 = arith.mulf %6, %229 : vector<4x256xf32>
    %cst_126 = arith.constant dense<0.000000e+00> : vector<256xf32>
    %231 = vector.multi_reduction <add>, %230, %cst_126 [0] : vector<4x256xf32> to vector<256xf32>
    %232 = vector.shape_cast %231 : vector<256xf32> to vector<1x256xf32>
    %cst_127 = arith.constant 0.000000e+00 : f32
    %233 = vector.broadcast %cst_127 : f32 to vector<1x256xf32>
    %234 = arith.select %28, %232, %233 : vector<1x256xi1>, vector<1x256xf32>
    %c0_128 = arith.constant 0 : index
    %c20_129 = arith.constant 20 : index
    %c0_130 = arith.constant 0 : index
    %235 = vector.load %arg3[%c0_128, %c20_129, %c0_130] : memref<1x25x256xf32, #tpu.memory_space<vmem>>, vector<1x1x256xf32>
    %236 = vector.shape_cast %235 : vector<1x1x256xf32> to vector<1x256xf32>
    %237 = vector.shape_cast %234 : vector<1x256xf32> to vector<1x1x256xf32>
    tpu.vector_store %arg3[%c0_128, %c20_129, %c0_130], %237 {strides = array<i32>} : memref<1x25x256xf32, #tpu.memory_space<vmem>>, vector<1x1x256xf32>,
    %c0_131 = arith.constant 0 : index
    %c65 = arith.constant 65 : index
    %238 = vector.load %arg4[%c0_131, %c65] : memref<4x324xf32, #tpu.memory_space<vmem>>, vector<4x256xf32>
    %239 = arith.mulf %6, %238 : vector<4x256xf32>
    %cst_132 = arith.constant dense<0.000000e+00> : vector<256xf32>
    %240 = vector.multi_reduction <add>, %239, %cst_132 [0] : vector<4x256xf32> to vector<256xf32>
    %241 = vector.shape_cast %240 : vector<256xf32> to vector<1x256xf32>
    %cst_133 = arith.constant 0.000000e+00 : f32
    %242 = vector.broadcast %cst_133 : f32 to vector<1x256xf32>
    %243 = arith.select %33, %241, %242 : vector<1x256xi1>, vector<1x256xf32>
    %c0_134 = arith.constant 0 : index
    %c21 = arith.constant 21 : index
    %c0_135 = arith.constant 0 : index
    %244 = vector.load %arg3[%c0_134, %c21, %c0_135] : memref<1x25x256xf32, #tpu.memory_space<vmem>>, vector<1x1x256xf32>
    %245 = vector.shape_cast %244 : vector<1x1x256xf32> to vector<1x256xf32>
    %246 = vector.shape_cast %243 : vector<1x256xf32> to vector<1x1x256xf32>
    tpu.vector_store %arg3[%c0_134, %c21, %c0_135], %246 {strides = array<i32>} : memref<1x25x256xf32, #tpu.memory_space<vmem>>, vector<1x1x256xf32>,
    %c0_136 = arith.constant 0 : index
    %c66 = arith.constant 66 : index
    %247 = vector.load %arg4[%c0_136, %c66] : memref<4x324xf32, #tpu.memory_space<vmem>>, vector<4x256xf32>
    %248 = arith.mulf %6, %247 : vector<4x256xf32>
    %cst_137 = arith.constant dense<0.000000e+00> : vector<256xf32>
    %249 = vector.multi_reduction <add>, %248, %cst_137 [0] : vector<4x256xf32> to vector<256xf32>
    %250 = vector.shape_cast %249 : vector<256xf32> to vector<1x256xf32>
    %cst_138 = arith.constant 0.000000e+00 : f32
    %251 = vector.broadcast %cst_138 : f32 to vector<1x256xf32>
    %252 = arith.select %38, %250, %251 : vector<1x256xi1>, vector<1x256xf32>
    %c0_139 = arith.constant 0 : index
    %c22 = arith.constant 22 : index
    %c0_140 = arith.constant 0 : index
    %253 = vector.load %arg3[%c0_139, %c22, %c0_140] : memref<1x25x256xf32, #tpu.memory_space<vmem>>, vector<1x1x256xf32>
    %254 = vector.shape_cast %253 : vector<1x1x256xf32> to vector<1x256xf32>
    %255 = vector.shape_cast %252 : vector<1x256xf32> to vector<1x1x256xf32>
    tpu.vector_store %arg3[%c0_139, %c22, %c0_140], %255 {strides = array<i32>} : memref<1x25x256xf32, #tpu.memory_space<vmem>>, vector<1x1x256xf32>,
    %c0_141 = arith.constant 0 : index
    %c67 = arith.constant 67 : index
    %256 = vector.load %arg4[%c0_141, %c67] : memref<4x324xf32, #tpu.memory_space<vmem>>, vector<4x256xf32>
    %257 = arith.mulf %6, %256 : vector<4x256xf32>
    %cst_142 = arith.constant dense<0.000000e+00> : vector<256xf32>
    %258 = vector.multi_reduction <add>, %257, %cst_142 [0] : vector<4x256xf32> to vector<256xf32>
    %259 = vector.shape_cast %258 : vector<256xf32> to vector<1x256xf32>
    %cst_143 = arith.constant 0.000000e+00 : f32
    %260 = vector.broadcast %cst_143 : f32 to vector<1x256xf32>
    %261 = arith.select %43, %259, %260 : vector<1x256xi1>, vector<1x256xf32>
    %c0_144 = arith.constant 0 : index
    %c23 = arith.constant 23 : index
    %c0_145 = arith.constant 0 : index
    %262 = vector.load %arg3[%c0_144, %c23, %c0_145] : memref<1x25x256xf32, #tpu.memory_space<vmem>>, vector<1x1x256xf32>
    %263 = vector.shape_cast %262 : vector<1x1x256xf32> to vector<1x256xf32>
    %264 = vector.shape_cast %261 : vector<1x256xf32> to vector<1x1x256xf32>
    tpu.vector_store %arg3[%c0_144, %c23, %c0_145], %264 {strides = array<i32>} : memref<1x25x256xf32, #tpu.memory_space<vmem>>, vector<1x1x256xf32>,
    %c0_146 = arith.constant 0 : index
    %c68 = arith.constant 68 : index
    %265 = vector.load %arg4[%c0_146, %c68] : memref<4x324xf32, #tpu.memory_space<vmem>>, vector<4x256xf32>
    %266 = arith.mulf %6, %265 : vector<4x256xf32>
    %cst_147 = arith.constant dense<0.000000e+00> : vector<256xf32>
    %267 = vector.multi_reduction <add>, %266, %cst_147 [0] : vector<4x256xf32> to vector<256xf32>
    %268 = vector.shape_cast %267 : vector<256xf32> to vector<1x256xf32>
    %cst_148 = arith.constant 0.000000e+00 : f32
    %269 = vector.broadcast %cst_148 : f32 to vector<1x256xf32>
    %270 = arith.select %48, %268, %269 : vector<1x256xi1>, vector<1x256xf32>
    %c0_149 = arith.constant 0 : index
    %c24 = arith.constant 24 : index
    %c0_150 = arith.constant 0 : index
    %271 = vector.load %arg3[%c0_149, %c24, %c0_150] : memref<1x25x256xf32, #tpu.memory_space<vmem>>, vector<1x1x256xf32>
    %272 = vector.shape_cast %271 : vector<1x1x256xf32> to vector<1x256xf32>
    %273 = vector.shape_cast %270 : vector<1x256xf32> to vector<1x1x256xf32>
    tpu.vector_store %arg3[%c0_149, %c24, %c0_150], %273 {strides = array<i32>} : memref<1x25x256xf32, #tpu.memory_space<vmem>>, vector<1x1x256xf32>,
    return
  }
  func.func @transform_0(%arg0: i32) -> (i32, i32, i32) {
    %c0_i32 = arith.constant 0 : i32
    %c0_i32_0 = arith.constant 0 : i32
    %c0_i32_1 = arith.constant 0 : i32
    return %arg0, %c0_i32, %c0_i32_0 : i32, i32, i32
  }
  func.func @transform_1(%arg0: i32) -> (i32, i32, i32) {
    %c0_i32 = arith.constant 0 : i32
    %c0_i32_0 = arith.constant 0 : i32
    %c0_i32_1 = arith.constant 0 : i32
    return %arg0, %c0_i32, %c0_i32_0 : i32, i32, i32
  }
  func.func @transform_2(%arg0: i32) -> (i32, i32, i32) {
    %c0_i32 = arith.constant 0 : i32
    %c0_i32_0 = arith.constant 0 : i32
    %c0_i32_1 = arith.constant 0 : i32
    return %arg0, %c0_i32, %c0_i32_0 : i32, i32, i32
  }
}

</mosaic_0001>

<llo_original>
// kernel: tpu_custom_call.1
$region0: #{tpu_custom_call.1}
  #allocation0 [shape = 'u32[]', space=smem, size = 0x4, offset = 0x4, fixed_abs, tag = 'smem constant byte address 0x4 - core index']
  #allocation1 [shape = 'u32[144,128]{1,0:T(1,128)}', space=vmem, size = 0x12000, scoped, tag = 'internal scratch']
  #allocation2 [shape = 'f32[4,324]{1,0:T(4,128)}', space=vmem, size = 0x1800, scoped, tag = 'scratch operand']
  %s0 = inlined_call_operand.hbm [shape: f32[2,4,256], index: 0, kind: input, shape index: {}]
  %s1 = inlined_call_operand.hbm [shape: f32[2,4,256], index: 1, kind: input, shape index: {}]
  %s2 = inlined_call_operand.vmem [shape: f32[2,25,256], index: 2, kind: output, shape index: {}]
  %s3 = sld [smem:[#allocation0]]
  $region49: #{tpu_custom_call.1} parent=0
    _
  %s5 = ssub.s32 1, %s3
  %s6 = scalar_select 0, %s5, %s3
  $region1: #{tpu_custom_call.1} parent=0
    #allocation3 [shape = 'u8[8192]{0}', space=vmem, size = 0x2000, scoped, tag = 'input window, operand 0']
    #allocation4 [shape = 's32[2]{0}', space=sflag, size = 0x8, scoped, tag = 'scoped memory for tpu_custom_call.1']
    #allocation5 [shape = 'u8[8192]{0}', space=vmem, size = 0x2000, scoped, tag = 'input window, operand 1']
    #allocation6 [shape = 's32[2]{0}', space=sflag, size = 0x8, scoped, tag = 'scoped memory for tpu_custom_call.1']
    %7 = vsyncpa [#allocation4], 0
    %s8 = scalar_lea.sflag [#allocation4], 1
    %9 = vsyncpa %s8, 0
    %10 = vsyncpa [#allocation6], 0
    %s11 = scalar_lea.sflag [#allocation6], 1
    %12 = vsyncpa %s11, 0
    loop: start=0, step=1, limit=4
    $region2: #{tpu_custom_call.1} parent=1 // loop_pre_header
      _
    $region3: #{tpu_custom_call.1} parent=1 // loop_header
      %s14 = sphi 0, %s18
      %p15 = scmp.ge.s32.totalorder %s14, 4
      %s24 = sphi 0, %s26
      %s27 = sphi 0, %s24
      %s28 = sphi 0, %s27
      %s44 = sphi 0, %s28
      %s50 = sphi 0, %s52
      %s53 = sphi 0, %s50
      %s54 = sphi 0, %s53
      %s70 = sphi 0, %s54
      %s76 = sphi 0, %s78
      %s79 = sphi 0, %s76
      %s80 = sphi 0, %s79
      %s96 = sphi 0, %s80
    $region4: #{tpu_custom_call.1} parent=1 // loop_header_branch
      %17 = sbr.rel (%p15) target = $region8
    $region5: #{tpu_custom_call.1} parent=1 // loop_body
      %s19 = ssub.s32 %s14, 1
      %s20 = ssub.s32 %s14, 2
      %s21 = sadd.s32 %s14, 1
      %s22 = ssub.s32 %s14, %s21
      %p23 = scmp.eq.s32.totalorder %s22, 0
      %s25 = sadd.s32 %s24, 1
      %s26 = scalar_select %p23, %s24, %s25
      %p29 = pneg %p23
      %p30 = scmp.eq.s32.totalorder %s14, 1
      %p31 = por %p29, %p30
      %p32 = scmp.ne.s32.totalorder %s24, %s27
      %p33 = scmp.eq.s32.totalorder %s14, 0
      %p34 = por %p32, %p33
      %p35 = scmp.ne.s32.totalorder %s24, %s27
      %p36 = scmp.eq.s32.totalorder %s19, 1
      %p37 = por %p35, %p36
      %p38 = scmp.ne.s32.totalorder %s27, %s28
      %p39 = scmp.eq.s32.totalorder %s19, 0
      %p40 = por %p38, %p39
      %p41 = scmp.ne.s32.totalorder %s27, %s28
      %p42 = scmp.eq.s32.totalorder %s20, 1
      %p43 = por %p41, %p42
      %p45 = scmp.ne.s32.totalorder %s28, %s44
      %p46 = scmp.eq.s32.totalorder %s20, 0
      %p47 = por %p45, %p46
      %s48 = ssub.s32 %s14, %s21
      %p49 = scmp.eq.s32.totalorder %s48, 0
      %s51 = sadd.s32 %s50, 1
      %s52 = scalar_select %p49, %s50, %s51
      %p55 = pneg %p49
      %p56 = scmp.eq.s32.totalorder %s14, 1
      %p57 = por %p55, %p56
      %p58 = scmp.ne.s32.totalorder %s50, %s53
      %p59 = scmp.eq.s32.totalorder %s14, 0
      %p60 = por %p58, %p59
      %p61 = scmp.ne.s32.totalorder %s50, %s53
      %p62 = scmp.eq.s32.totalorder %s19, 1
      %p63 = por %p61, %p62
      %p64 = scmp.ne.s32.totalorder %s53, %s54
      %p65 = scmp.eq.s32.totalorder %s19, 0
      %p66 = por %p64, %p65
      %p67 = scmp.ne.s32.totalorder %s53, %s54
      %p68 = scmp.eq.s32.totalorder %s20, 1
      %p69 = por %p67, %p68
      %p71 = scmp.ne.s32.totalorder %s54, %s70
      %p72 = scmp.eq.s32.totalorder %s20, 0
      %p73 = por %p71, %p72
      %s74 = ssub.s32 %s14, %s21
      %p75 = scmp.eq.s32.totalorder %s74, 0
      %s77 = sadd.s32 %s76, 1
      %s78 = scalar_select %p75, %s76, %s77
      %p81 = pneg %p75
      %p82 = scmp.eq.s32.totalorder %s14, 1
      %p83 = por %p81, %p82
      %p84 = scmp.ne.s32.totalorder %s76, %s79
      %p85 = scmp.eq.s32.totalorder %s14, 0
      %p86 = por %p84, %p85
      %p87 = scmp.ne.s32.totalorder %s76, %s79
      %p88 = scmp.eq.s32.totalorder %s19, 1
      %p89 = por %p87, %p88
      %p90 = scmp.ne.s32.totalorder %s79, %s80
      %p91 = scmp.eq.s32.totalorder %s19, 0
      %p92 = por %p90, %p91
      %p93 = scmp.ne.s32.totalorder %s79, %s80
      %p94 = scmp.eq.s32.totalorder %s20, 1
      %p95 = por %p93, %p94
      %p97 = scmp.ne.s32.totalorder %s80, %s96
      %p98 = scmp.eq.s32.totalorder %s20, 0
      %p99 = por %p97, %p98
      %p100 = scmp.le.s32.totalorder 1, %s14
      %p101 = scmp.lt.s32.totalorder %s14, 3
      %p102 = pnand %p100, %p101
      %p103 = pneg %p102
      // Predicated region
      $region9: #{tpu_custom_call.1} parent=5 // pred_check
        _
      $region10: #{tpu_custom_call.1} parent=5 // pred_check_branch
        %105 = sbr.rel (%p102) target = $region12
      $region11: #{tpu_custom_call.1} parent=5 // pred_region
        %s106 = ssub.s32 %s14, 1
      $region12: #{tpu_custom_call.1} parent=5 // pred_fallthru
        _
      %p107 = scmp.lt.s32.totalorder %s14, 2
      // Predicated region
      $region13: #{tpu_custom_call.1} parent=5 // pred_check
        %p108 = pneg %p107
      $region14: #{tpu_custom_call.1} parent=5 // pred_check_branch
        %110 = sbr.rel (%p108) target = $region16
      $region15: #{tpu_custom_call.1} parent=5 // pred_region
        // Predicated region
        $region17: #{tpu_custom_call.1} parent=15 // pred_check
          %p111 = pneg %p34
        $region18: #{tpu_custom_call.1} parent=15 // pred_check_branch
          %113 = sbr.rel (%p111) target = $region20
        $region19: #{tpu_custom_call.1} parent=15 // pred_region
          %s114 = sand.u32 %s24, 1
          %s115 = scalar_lea.sflag [#allocation4], %s114
          %s116 = sand.u32 %s24, 1
          %s117 = smul.addr %s116, 8
          %s118 = scalar_lea.vmem [#allocation3], %s117
          %s120 = ssub.s32 128, 128
          %121 = vsyncadd %s115, %s120
          %s122 = smul.addr %s14, 2
          %s123 = smul.addr %s122, 64
          %s124 = scalar_lea.hbm %s0, %s123
          %s126 = sshll.u32 %s118, 4
          %s127 = int_to_ptr.vmem [resolvable:$true] %s126
          %129 = dma.hbm_to_vmem [thread:$0]  %s124, 128, %s127, %s115
        $region20: #{tpu_custom_call.1} parent=15 // pred_fallthru
          _
        // Predicated region
        $region21: #{tpu_custom_call.1} parent=15 // pred_check
          %p130 = pneg %p60
        $region22: #{tpu_custom_call.1} parent=15 // pred_check_branch
          %132 = sbr.rel (%p130) target = $region24
        $region23: #{tpu_custom_call.1} parent=15 // pred_region
          %s133 = sand.u32 %s50, 1
          %s134 = scalar_lea.sflag [#allocation6], %s133
          %s135 = sand.u32 %s50, 1
          %s136 = smul.addr %s135, 8
          %s137 = scalar_lea.vmem [#allocation5], %s136
          %s139 = ssub.s32 128, 128
          %140 = vsyncadd %s134, %s139
          %s141 = smul.addr %s14, 2
          %s142 = smul.addr %s141, 64
          %s143 = scalar_lea.hbm %s1, %s142
          %s145 = sshll.u32 %s137, 4
          %s146 = int_to_ptr.vmem [resolvable:$true] %s145
          %148 = dma.hbm_to_vmem [thread:$0]  %s143, 128, %s146, %s134
        $region24: #{tpu_custom_call.1} parent=15 // pred_fallthru
          _
      $region16: #{tpu_custom_call.1} parent=5 // pred_fallthru
        _
      %p149 = scmp.le.s32.totalorder 1, %s14
      %p150 = scmp.lt.s32.totalorder %s14, 3
      %p151 = pnand %p149, %p150
      %p152 = pneg %p151
      // Predicated region
      $region25: #{tpu_custom_call.1} parent=5 // pred_check
        _
      $region26: #{tpu_custom_call.1} parent=5 // pred_check_branch
        %154 = sbr.rel (%p151) target = $region28
      $region27: #{tpu_custom_call.1} parent=5 // pred_region
        %s155 = ssub.s32 %s14, 1
        %s156 = sand.u32 %s27, 1
        %s157 = scalar_lea.sflag [#allocation4], %s156
        %s158 = sand.u32 %s27, 1
        %s159 = smul.addr %s158, 8
        %s160 = scalar_lea.vmem [#allocation3], %s159
        // Predicated region
        $region29: #{tpu_custom_call.1} parent=27 // pred_check
          %p161 = pneg %p40
        $region30: #{tpu_custom_call.1} parent=27 // pred_check_branch
          %163 = sbr.rel (%p161) target = $region32
        $region31: #{tpu_custom_call.1} parent=27 // pred_region
          %164 = dma.done %s157, 128
        $region32: #{tpu_custom_call.1} parent=27 // pred_fallthru
          _
        %s165 = sand.u32 %s53, 1
        %s166 = scalar_lea.sflag [#allocation6], %s165
        %s167 = sand.u32 %s53, 1
        %s168 = smul.addr %s167, 8
        %s169 = scalar_lea.vmem [#allocation5], %s168
        // Predicated region
        $region33: #{tpu_custom_call.1} parent=27 // pred_check
          %p170 = pneg %p66
        $region34: #{tpu_custom_call.1} parent=27 // pred_check_branch
          %172 = sbr.rel (%p170) target = $region36
        $region35: #{tpu_custom_call.1} parent=27 // pred_region
          %173 = dma.done %s166, 128
        $region36: #{tpu_custom_call.1} parent=27 // pred_fallthru
          _
        %s174 = sand.u32 %s27, 1
        %s175 = scalar_lea.sflag [#allocation4], %s174
        %s176 = sand.u32 %s27, 1
        %s177 = smul.addr %s176, 8
        %s178 = scalar_lea.vmem [#allocation3], %s177
        %p179 = pneg %p40
        %p180 = pneg %p37
        %s181 = sand.u32 %s53, 1
        %s182 = scalar_lea.sflag [#allocation6], %s181
        %s183 = sand.u32 %s53, 1
        %s184 = smul.addr %s183, 8
        %s185 = scalar_lea.vmem [#allocation5], %s184
        %p186 = pneg %p66
        %p187 = pneg %p63
        %p188 = pneg %p92
        %p189 = pneg %p89
        %p190 = scmp.lt.s32.totalorder %s19, 1
        %s191 = scalar_select %p190, %s19, 1
        %s192 = smul.addr %s191, 8
        %s193 = smul.addr %s192, 8
        %s194 = scalar_lea.vmem %s2, %s193
        %p195 = scmp.lt.s32.totalorder %s19, 1
        %s196 = scalar_select %p195, %s19, 1
        %s197 = smul.addr %s196, 8
        %s198 = smul.addr %s197, 8
        %s199 = scalar_lea.vmem %s2, %s198
        %200 = vst [vmem:[#allocation2] sm:$0xff] 0.0
        %vm201 = vcmask 551936
        %202 = vst.msk [vmem:[#allocation2 + $0x8] sm:$0xf] %vm201, 0.0
        %v203 = vld [vmem:[%s169] sm:$0xff]
        %205 = vrot.lane.b32.xlu0 %v203, 34
        %v206 = vpop.permute.xlu0 %205
        %v207 = vrot.slane %v206, 4
        %vm208 = vcmask 277504
        %v209 = vsel %vm208, %v207, %v206
        %vm212 = vcmask 1043728
        %vm213 = vcmask 1047556
        %vm214 = vmor %vm213, %vm212
        %215 = vst.msk [vmem:[#allocation2] sm:$0xff] %vm214, %v209
        %vm216 = vcmask 273408
        %217 = vst.msk [vmem:[#allocation2 + $0x8] sm:$0xf] %vm216, %v207
        %v218 = vld [vmem:[%s160] sm:$0xff]
        %v219 = vlaneseq
        %v220 = vand.u32 %v219, 127
        %v221 = vadd.s32 %v220, 128
        %vm222 = vcmp.lt.s32.totalorder %v220, 0
        %v223 = vsub.s32 0, %v220
        %v224 = vsel %vm222, %v223, %v220
        %v225 = vshrl.u32 %v224, 4
        %v226 = vand.u32 %v224, 15
        %v227 = vsub.s32 0, %v226
        %v228 = vsel %vm222, %v227, %v226
        %vm229 = vcmp.lt.s32.totalorder %v221, 0
        %v230 = vsub.s32 0, %v221
        %v231 = vsel %vm229, %v230, %v221
        %v232 = vshrl.u32 %v231, 4
        %v233 = vand.u32 %v231, 15
        %v234 = vsub.s32 0, %v233
        %v235 = vsel %vm229, %v234, %v233
        %vm236 = vcmp.ne.s32.totalorder %v228, 0
        %vm237 = vcmp.ne.s32.totalorder %v235, 0
        %vm238 = vcmp.lt.s32.totalorder %v228, 0
        %vm239 = vcmp.lt.s32.totalorder %v235, 0
        %vm240 = vmand %vm238, %vm236
        %vm241 = vmand %vm239, %vm237
        %v242 = vadd.s32 %v228, 16
        %v243 = vadd.s32 %v235, 16
        %v244 = vsel %vm240, %v242, %v228
        %v245 = vsel %vm241, %v243, %v235
        %vm246 = vcmp.ge.s32.totalorder %v244, 2
        %vm247 = vcmp.ge.s32.totalorder %v245, 2
        %vm248 = vcmp.lt.s32.totalorder %v244, 18
        %vm249 = vcmp.lt.s32.totalorder %v245, 18
        %vm250 = vmand %vm246, %vm248
        %vm251 = vmand %vm247, %vm249
        %vm252 = vcmp.ge.s32.totalorder %v244, 1
        %vm253 = vcmp.ge.s32.totalorder %v245, 1
        %vm254 = vcmp.lt.s32.totalorder %v244, 17
        %vm255 = vcmp.lt.s32.totalorder %v245, 17
        %vm256 = vmand %vm252, %vm254
        %vm257 = vmand %vm253, %vm255
        %vm258 = vcmp.ge.s32.totalorder %v244, 0
        %vm259 = vcmp.ge.s32.totalorder %v245, 0
        %vm260 = vcmp.lt.s32.totalorder %v244, 16
        %vm261 = vcmp.lt.s32.totalorder %v245, 16
        %vm262 = vmand %vm258, %vm260
        %vm263 = vmand %vm259, %vm261
        %vm264 = vcmp.ge.s32.totalorder %v244, 4294967295
        %vm265 = vcmp.ge.s32.totalorder %v245, 4294967295
        %vm266 = vcmp.lt.s32.totalorder %v244, 15
        %vm267 = vcmp.lt.s32.totalorder %v245, 15
        %vm268 = vmand %vm264, %vm266
        %vm269 = vmand %vm265, %vm267
        %vm270 = vcmp.ge.s32.totalorder %v244, 4294967294
        %vm271 = vcmp.ge.s32.totalorder %v245, 4294967294
        %vm272 = vcmp.lt.s32.totalorder %v244, 14
        %vm273 = vcmp.lt.s32.totalorder %v245, 14
        %vm274 = vmand %vm270, %vm272
        %vm275 = vmand %vm271, %vm273
        %v276 = vld [vmem:[#allocation2] sm:$0xff]
        %v277 = vmul.f32 %v218, %v276
        %v279 = vcombine.high %v277, %v277
        %vm281 = vcmask 1043456
        %v282 = vsel %vm281, %v277, 0.0
        %v283 = vrot.slane %v282, 4
        %v284 = vadd.f32 %v282, %v283
        %v285 = vrot.slane %v284, 2
        %v286 = vadd.f32 %v284, %v285
        %v287 = vrot.slane %v286, 1
        %v288 = vadd.f32 %v286, %v287
        %v289 = vsel %vm281, %v279, 0.0
        %v290 = vrot.slane %v289, 4
        %v291 = vadd.f32 %v289, %v290
        %v292 = vrot.slane %v291, 2
        %v293 = vadd.f32 %v291, %v292
        %v294 = vrot.slane %v293, 1
        %v295 = vadd.f32 %v293, %v294
        %v296 = vsel %vm250, %v288, 0.0
        %v297 = vsel %vm251, %v295, 0.0
        %v300 = vcombine.low %v296, %v297
        %v302 = vunpack.c.l.s4 1966171168
        %v303 = vunpack.c.0.s8 %v302
        %v304 = vlaneseq
        %v305 = vshrl.u32 %v304, 7
        %v306 = vsub.s32 %v303, %v305
        %v307 = vrot.slane %v300, %v306
        %v309 = vunpack.c.l.s4 1966171168
        %v310 = vunpack.c.0.s8 %v309
        %v311 = vlaneseq
        %v312 = vshrl.u32 %v311, 7
        %v313 = vsub.s32 %v310, %v312
        %v314 = vrot.slane %v307, %v313
        %v316 = vlaneseq
        %vm317 = vcmp.ge.s32.totalorder %v316, 0
        %vm318 = vcmp.lt.s32.totalorder %v316, 256
        %vm319 = vmand %vm317, %vm318
        %320 = vst.msk [vmem:[%s199] ss:$8 sm:$0x3] %vm319, %v314
        %321 = vst.msk [vmem:[%s199] ss:$8 sm:$0x0] %vm319, %v314
        %v322 = vld [vmem:[#allocation2] sm:$0xff]
        %v323 = vld [vmem:[#allocation2 + $0x8] sm:$0xf]
        %326 = vrot.lane.b32.xlu0 %v322, 127
        %v327 = vpop.permute.xlu0 %326
        %328 = vrot.lane.b32.xlu0 %v323, 127
        %v329 = vpop.permute.xlu0 %328
        %v330 = vrot.slane %v327, 4
        %v331 = vrot.slane %v329, 4
        %v332 = vsel %vm281, %v330, %v331
        %vm333 = vcmask 1039360
        %v334 = vsel %vm333, %v327, %v332
        %v336 = vmul.f32 %v218, %v334
        %v338 = vcombine.high %v336, %v336
        %v340 = vsel %vm281, %v336, 0.0
        %v341 = vrot.slane %v340, 4
        %v342 = vadd.f32 %v340, %v341
        %v343 = vrot.slane %v342, 2
        %v344 = vadd.f32 %v342, %v343
        %v345 = vrot.slane %v344, 1
        %v346 = vadd.f32 %v344, %v345
        %v347 = vsel %vm281, %v338, 0.0
        %v348 = vrot.slane %v347, 4
        %v349 = vadd.f32 %v347, %v348
        %v350 = vrot.slane %v349, 2
        %v351 = vadd.f32 %v349, %v350
        %v352 = vrot.slane %v351, 1
        %v353 = vadd.f32 %v351, %v352
        %v354 = vsel %vm256, %v346, 0.0
        %v355 = vsel %vm257, %v353, 0.0
        %v358 = vcombine.low %v354, %v355
        %v360 = vunpack.c.l.s4 1966171168
        %v361 = vunpack.c.0.s8 %v360
        %v362 = vlaneseq
        %v363 = vshrl.u32 %v362, 7
        %v364 = vsub.s32 %v361, %v363
        %v365 = vrot.slane %v358, %v364
        %v367 = vunpack.c.l.s4 1966171168
        %v368 = vunpack.c.0.s8 %v367
        %v369 = vlaneseq
        %v370 = vshrl.u32 %v369, 7
        %v371 = vsub.s32 %v368, %v370
        %v372 = vrot.slane %v365, %v371
        %s374 = scalar_lea.vmem %s199, 1
        %375 = vst.msk [vmem:[%s374] ss:$8 sm:$0x3] %vm319, %v372
        %376 = vst.msk [vmem:[%s374] ss:$8 sm:$0x0] %vm319, %v372
        %v377 = vld [vmem:[#allocation2] sm:$0xff]
        %v378 = vld [vmem:[#allocation2 + $0x8] sm:$0xf]
        %381 = vrot.lane.b32.xlu0 %v377, 126
        %v382 = vpop.permute.xlu0 %381
        %383 = vrot.lane.b32.xlu0 %v378, 126
        %v384 = vpop.permute.xlu0 %383
        %v385 = vrot.slane %v382, 4
        %v386 = vrot.slane %v384, 4
        %v387 = vsel %vm281, %v385, %v386
        %vm388 = vcmask 1031168
        %v389 = vsel %vm388, %v382, %v387
        %v391 = vmul.f32 %v218, %v389
        %v393 = vcombine.high %v391, %v391
        %v395 = vsel %vm281, %v391, 0.0
        %v396 = vrot.slane %v395, 4
        %v397 = vadd.f32 %v395, %v396
        %v398 = vrot.slane %v397, 2
        %v399 = vadd.f32 %v397, %v398
        %v400 = vrot.slane %v399, 1
        %v401 = vadd.f32 %v399, %v400
        %v402 = vsel %vm281, %v393, 0.0
        %v403 = vrot.slane %v402, 4
        %v404 = vadd.f32 %v402, %v403
        %v405 = vrot.slane %v404, 2
        %v406 = vadd.f32 %v404, %v405
        %v407 = vrot.slane %v406, 1
        %v408 = vadd.f32 %v406, %v407
        %v409 = vsel %vm262, %v401, 0.0
        %v410 = vsel %vm263, %v408, 0.0
        %v413 = vcombine.low %v409, %v410
        %v415 = vunpack.c.l.s4 1966171168
        %v416 = vunpack.c.0.s8 %v415
        %v417 = vlaneseq
        %v418 = vshrl.u32 %v417, 7
        %v419 = vsub.s32 %v416, %v418
        %v420 = vrot.slane %v413, %v419
        %v422 = vunpack.c.l.s4 1966171168
        %v423 = vunpack.c.0.s8 %v422
        %v424 = vlaneseq
        %v425 = vshrl.u32 %v424, 7
        %v426 = vsub.s32 %v423, %v425
        %v427 = vrot.slane %v420, %v426
        %s429 = scalar_lea.vmem %s199, 2
        %430 = vst.msk [vmem:[%s429] ss:$8 sm:$0x3] %vm319, %v427
        %431 = vst.msk [vmem:[%s429] ss:$8 sm:$0x0] %vm319, %v427
        %v432 = vld [vmem:[#allocation2] sm:$0xff]
        %v433 = vld [vmem:[#allocation2 + $0x8] sm:$0xf]
        %436 = vrot.lane.b32.xlu0 %v432, 125
        %v437 = vpop.permute.xlu0 %436
        %438 = vrot.lane.b32.xlu0 %v433, 125
        %v439 = vpop.permute.xlu0 %438
        %v440 = vrot.slane %v437, 4
        %v441 = vrot.slane %v439, 4
        %v442 = vsel %vm281, %v440, %v441
        %vm443 = vcmask 1022976
        %v444 = vsel %vm443, %v437, %v442
        %v446 = vmul.f32 %v218, %v444
        %v448 = vcombine.high %v446, %v446
        %v450 = vsel %vm281, %v446, 0.0
        %v451 = vrot.slane %v450, 4
        %v452 = vadd.f32 %v450, %v451
        %v453 = vrot.slane %v452, 2
        %v454 = vadd.f32 %v452, %v453
        %v455 = vrot.slane %v454, 1
        %v456 = vadd.f32 %v454, %v455
        %v457 = vsel %vm281, %v448, 0.0
        %v458 = vrot.slane %v457, 4
        %v459 = vadd.f32 %v457, %v458
        %v460 = vrot.slane %v459, 2
        %v461 = vadd.f32 %v459, %v460
        %v462 = vrot.slane %v461, 1
        %v463 = vadd.f32 %v461, %v462
        %v464 = vsel %vm268, %v456, 0.0
        %v465 = vsel %vm269, %v463, 0.0
        %v468 = vcombine.low %v464, %v465
        %v470 = vunpack.c.l.s4 1966171168
        %v471 = vunpack.c.0.s8 %v470
        %v472 = vlaneseq
        %v473 = vshrl.u32 %v472, 7
        %v474 = vsub.s32 %v471, %v473
        %v475 = vrot.slane %v468, %v474
        %v477 = vunpack.c.l.s4 1966171168
        %v478 = vunpack.c.0.s8 %v477
        %v479 = vlaneseq
        %v480 = vshrl.u32 %v479, 7
        %v481 = vsub.s32 %v478, %v480
        %v482 = vrot.slane %v475, %v481
        %s484 = scalar_lea.vmem %s199, 3
        %485 = vst.msk [vmem:[%s484] ss:$8 sm:$0x3] %vm319, %v482
        %486 = vst.msk [vmem:[%s484] ss:$8 sm:$0x0] %vm319, %v482
        %v487 = vld [vmem:[#allocation2] sm:$0xff]
        %v488 = vld [vmem:[#allocation2 + $0x8] sm:$0xf]
        %491 = vrot.lane.b32.xlu0 %v487, 124
        %v492 = vpop.permute.xlu0 %491
        %493 = vrot.lane.b32.xlu0 %v488, 124
        %v494 = vpop.permute.xlu0 %493
        %v495 = vrot.slane %v492, 4
        %v496 = vrot.slane %v494, 4
        %v497 = vsel %vm281, %v495, %v496
        %vm498 = vcmask 1014784
        %v499 = vsel %vm498, %v492, %v497
        %v501 = vmul.f32 %v218, %v499
        %v503 = vcombine.high %v501, %v501
        %v505 = vsel %vm281, %v501, 0.0
        %v506 = vrot.slane %v505, 4
        %v507 = vadd.f32 %v505, %v506
        %v508 = vrot.slane %v507, 2
        %v509 = vadd.f32 %v507, %v508
        %v510 = vrot.slane %v509, 1
        %v511 = vadd.f32 %v509, %v510
        %v512 = vsel %vm281, %v503, 0.0
        %v513 = vrot.slane %v512, 4
        %v514 = vadd.f32 %v512, %v513
        %v515 = vrot.slane %v514, 2
        %v516 = vadd.f32 %v514, %v515
        %v517 = vrot.slane %v516, 1
        %v518 = vadd.f32 %v516, %v517
        %v519 = vsel %vm274, %v511, 0.0
        %v520 = vsel %vm275, %v518, 0.0
        %v523 = vcombine.low %v519, %v520
        %v525 = vunpack.c.l.s4 1966171168
        %v526 = vunpack.c.0.s8 %v525
        %v527 = vlaneseq
        %v528 = vshrl.u32 %v527, 7
        %v529 = vsub.s32 %v526, %v528
        %v530 = vrot.slane %v523, %v529
        %v532 = vunpack.c.l.s4 1966171168
        %v533 = vunpack.c.0.s8 %v532
        %v534 = vlaneseq
        %v535 = vshrl.u32 %v534, 7
        %v536 = vsub.s32 %v533, %v535
        %v537 = vrot.slane %v530, %v536
        %s539 = scalar_lea.vmem %s199, 4
        %540 = vst.msk [vmem:[%s539] ss:$8 sm:$0x3] %vm319, %v537
        %541 = vst.msk [vmem:[%s539] ss:$8 sm:$0x0] %vm319, %v537
        %v542 = vld [vmem:[#allocation2] sm:$0xff]
        %v543 = vld [vmem:[#allocation2 + $0x8] sm:$0xf]
        %546 = vrot.lane.b32.xlu0 %v542, 112
        %v547 = vpop.permute.xlu0 %546
        %548 = vrot.lane.b32.xlu0 %v543, 112
        %v549 = vpop.permute.xlu0 %548
        %v550 = vrot.slane %v547, 4
        %v551 = vrot.slane %v549, 4
        %v552 = vsel %vm281, %v550, %v551
        %vm553 = vcmask 916480
        %v554 = vsel %vm553, %v547, %v552
        %v556 = vmul.f32 %v218, %v554
        %v558 = vcombine.high %v556, %v556
        %v560 = vsel %vm281, %v556, 0.0
        %v561 = vrot.slane %v560, 4
        %v562 = vadd.f32 %v560, %v561
        %v563 = vrot.slane %v562, 2
        %v564 = vadd.f32 %v562, %v563
        %v565 = vrot.slane %v564, 1
        %v566 = vadd.f32 %v564, %v565
        %v567 = vsel %vm281, %v558, 0.0
        %v568 = vrot.slane %v567, 4
        %v569 = vadd.f32 %v567, %v568
        %v570 = vrot.slane %v569, 2
        %v571 = vadd.f32 %v569, %v570
        %v572 = vrot.slane %v571, 1
        %v573 = vadd.f32 %v571, %v572
        %v574 = vsel %vm250, %v566, 0.0
        %v575 = vsel %vm251, %v573, 0.0
        %v578 = vcombine.low %v574, %v575
        %v580 = vunpack.c.l.s4 1966171168
        %v581 = vunpack.c.0.s8 %v580
        %v582 = vlaneseq
        %v583 = vshrl.u32 %v582, 7
        %v584 = vsub.s32 %v581, %v583
        %v585 = vrot.slane %v578, %v584
        %v587 = vunpack.c.l.s4 1966171168
        %v588 = vunpack.c.0.s8 %v587
        %v589 = vlaneseq
        %v590 = vshrl.u32 %v589, 7
        %v591 = vsub.s32 %v588, %v590
        %v592 = vrot.slane %v585, %v591
        %s594 = scalar_lea.vmem %s199, 5
        %595 = vst.msk [vmem:[%s594] ss:$8 sm:$0x3] %vm319, %v592
        %596 = vst.msk [vmem:[%s594] ss:$8 sm:$0x0] %vm319, %v592
        %v597 = vld [vmem:[#allocation2] sm:$0xff]
        %v598 = vld [vmem:[#allocation2 + $0x8] sm:$0xf]
        %601 = vrot.lane.b32.xlu0 %v597, 111
        %v602 = vpop.permute.xlu0 %601
        %603 = vrot.lane.b32.xlu0 %v598, 111
        %v604 = vpop.permute.xlu0 %603
        %v605 = vrot.slane %v602, 4
        %v606 = vrot.slane %v604, 4
        %v607 = vsel %vm281, %v605, %v606
        %vm608 = vcmask 908288
        %v609 = vsel %vm608, %v602, %v607
        %v611 = vmul.f32 %v218, %v609
        %v613 = vcombine.high %v611, %v611
        %v615 = vsel %vm281, %v611, 0.0
        %v616 = vrot.slane %v615, 4
        %v617 = vadd.f32 %v615, %v616
        %v618 = vrot.slane %v617, 2
        %v619 = vadd.f32 %v617, %v618
        %v620 = vrot.slane %v619, 1
        %v621 = vadd.f32 %v619, %v620
        %v622 = vsel %vm281, %v613, 0.0
        %v623 = vrot.slane %v622, 4
        %v624 = vadd.f32 %v622, %v623
        %v625 = vrot.slane %v624, 2
        %v626 = vadd.f32 %v624, %v625
        %v627 = vrot.slane %v626, 1
        %v628 = vadd.f32 %v626, %v627
        %v629 = vsel %vm256, %v621, 0.0
        %v630 = vsel %vm257, %v628, 0.0
        %v633 = vcombine.low %v629, %v630
        %v635 = vunpack.c.l.s4 1966171168
        %v636 = vunpack.c.0.s8 %v635
        %v637 = vlaneseq
        %v638 = vshrl.u32 %v637, 7
        %v639 = vsub.s32 %v636, %v638
        %v640 = vrot.slane %v633, %v639
        %v642 = vunpack.c.l.s4 1966171168
        %v643 = vunpack.c.0.s8 %v642
        %v644 = vlaneseq
        %v645 = vshrl.u32 %v644, 7
        %v646 = vsub.s32 %v643, %v645
        %v647 = vrot.slane %v640, %v646
        %s649 = scalar_lea.vmem %s199, 6
        %650 = vst.msk [vmem:[%s649] ss:$8 sm:$0x3] %vm319, %v647
        %651 = vst.msk [vmem:[%s649] ss:$8 sm:$0x0] %vm319, %v647
        %v652 = vld [vmem:[#allocation2] sm:$0xff]
        %v653 = vld [vmem:[#allocation2 + $0x8] sm:$0xf]
        %656 = vrot.lane.b32.xlu0 %v652, 110
        %v657 = vpop.permute.xlu0 %656
        %658 = vrot.lane.b32.xlu0 %v653, 110
        %v659 = vpop.permute.xlu0 %658
        %v660 = vrot.slane %v657, 4
        %v661 = vrot.slane %v659, 4
        %v662 = vsel %vm281, %v660, %v661
        %vm663 = vcmask 900096
        %v664 = vsel %vm663, %v657, %v662
        %v666 = vmul.f32 %v218, %v664
        %v668 = vcombine.high %v666, %v666
        %v670 = vsel %vm281, %v666, 0.0
        %v671 = vrot.slane %v670, 4
        %v672 = vadd.f32 %v670, %v671
        %v673 = vrot.slane %v672, 2
        %v674 = vadd.f32 %v672, %v673
        %v675 = vrot.slane %v674, 1
        %v676 = vadd.f32 %v674, %v675
        %v677 = vsel %vm281, %v668, 0.0
        %v678 = vrot.slane %v677, 4
        %v679 = vadd.f32 %v677, %v678
        %v680 = vrot.slane %v679, 2
        %v681 = vadd.f32 %v679, %v680
        %v682 = vrot.slane %v681, 1
        %v683 = vadd.f32 %v681, %v682
        %v684 = vsel %vm262, %v676, 0.0
        %v685 = vsel %vm263, %v683, 0.0
        %v688 = vcombine.low %v684, %v685
        %v690 = vunpack.c.l.s4 1966171168
        %v691 = vunpack.c.0.s8 %v690
        %v692 = vlaneseq
        %v693 = vshrl.u32 %v692, 7
        %v694 = vsub.s32 %v691, %v693
        %v695 = vrot.slane %v688, %v694
        %v697 = vunpack.c.l.s4 1966171168
        %v698 = vunpack.c.0.s8 %v697
        %v699 = vlaneseq
        %v700 = vshrl.u32 %v699, 7
        %v701 = vsub.s32 %v698, %v700
        %v702 = vrot.slane %v695, %v701
        %s704 = scalar_lea.vmem %s199, 7
        %705 = vst.msk [vmem:[%s704] ss:$8 sm:$0x3] %vm319, %v702
        %706 = vst.msk [vmem:[%s704] ss:$8 sm:$0x0] %vm319, %v702
        %v707 = vld [vmem:[#allocation2] sm:$0xff]
        %v708 = vld [vmem:[#allocation2 + $0x8] sm:$0xf]
        %711 = vrot.lane.b32.xlu0 %v707, 109
        %v712 = vpop.permute.xlu0 %711
        %713 = vrot.lane.b32.xlu0 %v708, 109
        %v714 = vpop.permute.xlu0 %713
        %v715 = vrot.slane %v712, 4
        %v716 = vrot.slane %v714, 4
        %v717 = vsel %vm281, %v715, %v716
        %vm718 = vcmask 891904
        %v719 = vsel %vm718, %v712, %v717
        %v721 = vmul.f32 %v218, %v719
        %v723 = vcombine.high %v721, %v721
        %v725 = vsel %vm281, %v721, 0.0
        %v726 = vrot.slane %v725, 4
        %v727 = vadd.f32 %v725, %v726
        %v728 = vrot.slane %v727, 2
        %v729 = vadd.f32 %v727, %v728
        %v730 = vrot.slane %v729, 1
        %v731 = vadd.f32 %v729, %v730
        %v732 = vsel %vm281, %v723, 0.0
        %v733 = vrot.slane %v732, 4
        %v734 = vadd.f32 %v732, %v733
        %v735 = vrot.slane %v734, 2
        %v736 = vadd.f32 %v734, %v735
        %v737 = vrot.slane %v736, 1
        %v738 = vadd.f32 %v736, %v737
        %v739 = vsel %vm268, %v731, 0.0
        %v740 = vsel %vm269, %v738, 0.0
        %v743 = vcombine.low %v739, %v740
        %v745 = vunpack.c.l.s4 1966171168
        %v746 = vunpack.c.0.s8 %v745
        %v747 = vlaneseq
        %v748 = vshrl.u32 %v747, 7
        %v749 = vsub.s32 %v746, %v748
        %v750 = vrot.slane %v743, %v749
        %v752 = vunpack.c.l.s4 1966171168
        %v753 = vunpack.c.0.s8 %v752
        %v754 = vlaneseq
        %v755 = vshrl.u32 %v754, 7
        %v756 = vsub.s32 %v753, %v755
        %v757 = vrot.slane %v750, %v756
        %s759 = scalar_lea.vmem %s199, 16
        %760 = vst.msk [vmem:[%s759] ss:$8 sm:$0x3] %vm319, %v757
        %761 = vst.msk [vmem:[%s759] ss:$8 sm:$0x0] %vm319, %v757
        %v762 = vld [vmem:[#allocation2] sm:$0xff]
        %v763 = vld [vmem:[#allocation2 + $0x8] sm:$0xf]
        %766 = vrot.lane.b32.xlu0 %v762, 108
        %v767 = vpop.permute.xlu0 %766
        %768 = vrot.lane.b32.xlu0 %v763, 108
        %v769 = vpop.permute.xlu0 %768
        %v770 = vrot.slane %v767, 4
        %v771 = vrot.slane %v769, 4
        %v772 = vsel %vm281, %v770, %v771
        %vm773 = vcmask 883712
        %v774 = vsel %vm773, %v767, %v772
        %v776 = vmul.f32 %v218, %v774
        %v778 = vcombine.high %v776, %v776
        %v780 = vsel %vm281, %v776, 0.0
        %v781 = vrot.slane %v780, 4
        %v782 = vadd.f32 %v780, %v781
        %v783 = vrot.slane %v782, 2
        %v784 = vadd.f32 %v782, %v783
        %v785 = vrot.slane %v784, 1
        %v786 = vadd.f32 %v784, %v785
        %v787 = vsel %vm281, %v778, 0.0
        %v788 = vrot.slane %v787, 4
        %v789 = vadd.f32 %v787, %v788
        %v790 = vrot.slane %v789, 2
        %v791 = vadd.f32 %v789, %v790
        %v792 = vrot.slane %v791, 1
        %v793 = vadd.f32 %v791, %v792
        %v794 = vsel %vm274, %v786, 0.0
        %v795 = vsel %vm275, %v793, 0.0
        %v798 = vcombine.low %v794, %v795
        %v800 = vunpack.c.l.s4 1966171168
        %v801 = vunpack.c.0.s8 %v800
        %v802 = vlaneseq
        %v803 = vshrl.u32 %v802, 7
        %v804 = vsub.s32 %v801, %v803
        %v805 = vrot.slane %v798, %v804
        %v807 = vunpack.c.l.s4 1966171168
        %v808 = vunpack.c.0.s8 %v807
        %v809 = vlaneseq
        %v810 = vshrl.u32 %v809, 7
        %v811 = vsub.s32 %v808, %v810
        %v812 = vrot.slane %v805, %v811
        %s814 = scalar_lea.vmem %s199, 17
        %815 = vst.msk [vmem:[%s814] ss:$8 sm:$0x3] %vm319, %v812
        %816 = vst.msk [vmem:[%s814] ss:$8 sm:$0x0] %vm319, %v812
        %v817 = vld [vmem:[#allocation2] sm:$0xff]
        %v818 = vld [vmem:[#allocation2 + $0x8] sm:$0xf]
        %821 = vrot.lane.b32.xlu0 %v817, 96
        %v822 = vpop.permute.xlu0 %821
        %823 = vrot.lane.b32.xlu0 %v818, 96
        %v824 = vpop.permute.xlu0 %823
        %v825 = vrot.slane %v822, 4
        %v826 = vrot.slane %v824, 4
        %v827 = vsel %vm281, %v825, %v826
        %vm828 = vcmask 785408
        %v829 = vsel %vm828, %v822, %v827
        %v831 = vmul.f32 %v218, %v829
        %v833 = vcombine.high %v831, %v831
        %v835 = vsel %vm281, %v831, 0.0
        %v836 = vrot.slane %v835, 4
        %v837 = vadd.f32 %v835, %v836
        %v838 = vrot.slane %v837, 2
        %v839 = vadd.f32 %v837, %v838
        %v840 = vrot.slane %v839, 1
        %v841 = vadd.f32 %v839, %v840
        %v842 = vsel %vm281, %v833, 0.0
        %v843 = vrot.slane %v842, 4
        %v844 = vadd.f32 %v842, %v843
        %v845 = vrot.slane %v844, 2
        %v846 = vadd.f32 %v844, %v845
        %v847 = vrot.slane %v846, 1
        %v848 = vadd.f32 %v846, %v847
        %v849 = vsel %vm250, %v841, 0.0
        %v850 = vsel %vm251, %v848, 0.0
        %v853 = vcombine.low %v849, %v850
        %v855 = vunpack.c.l.s4 1966171168
        %v856 = vunpack.c.0.s8 %v855
        %v857 = vlaneseq
        %v858 = vshrl.u32 %v857, 7
        %v859 = vsub.s32 %v856, %v858
        %v860 = vrot.slane %v853, %v859
        %v862 = vunpack.c.l.s4 1966171168
        %v863 = vunpack.c.0.s8 %v862
        %v864 = vlaneseq
        %v865 = vshrl.u32 %v864, 7
        %v866 = vsub.s32 %v863, %v865
        %v867 = vrot.slane %v860, %v866
        %s869 = scalar_lea.vmem %s199, 18
        %870 = vst.msk [vmem:[%s869] ss:$8 sm:$0x3] %vm319, %v867
        %871 = vst.msk [vmem:[%s869] ss:$8 sm:$0x0] %vm319, %v867
        %v872 = vld [vmem:[#allocation2] sm:$0xff]
        %v873 = vld [vmem:[#allocation2 + $0x8] sm:$0xf]
        %876 = vrot.lane.b32.xlu0 %v872, 95
        %v877 = vpop.permute.xlu0 %876
        %878 = vrot.lane.b32.xlu0 %v873, 95
        %v879 = vpop.permute.xlu0 %878
        %v880 = vrot.slane %v877, 4
        %v881 = vrot.slane %v879, 4
        %v882 = vsel %vm281, %v880, %v881
        %vm883 = vcmask 777216
        %v884 = vsel %vm883, %v877, %v882
        %v886 = vmul.f32 %v218, %v884
        %v888 = vcombine.high %v886, %v886
        %v890 = vsel %vm281, %v886, 0.0
        %v891 = vrot.slane %v890, 4
        %v892 = vadd.f32 %v890, %v891
        %v893 = vrot.slane %v892, 2
        %v894 = vadd.f32 %v892, %v893
        %v895 = vrot.slane %v894, 1
        %v896 = vadd.f32 %v894, %v895
        %v897 = vsel %vm281, %v888, 0.0
        %v898 = vrot.slane %v897, 4
        %v899 = vadd.f32 %v897, %v898
        %v900 = vrot.slane %v899, 2
        %v901 = vadd.f32 %v899, %v900
        %v902 = vrot.slane %v901, 1
        %v903 = vadd.f32 %v901, %v902
        %v904 = vsel %vm256, %v896, 0.0
        %v905 = vsel %vm257, %v903, 0.0
        %v908 = vcombine.low %v904, %v905
        %v910 = vunpack.c.l.s4 1966171168
        %v911 = vunpack.c.0.s8 %v910
        %v912 = vlaneseq
        %v913 = vshrl.u32 %v912, 7
        %v914 = vsub.s32 %v911, %v913
        %v915 = vrot.slane %v908, %v914
        %v917 = vunpack.c.l.s4 1966171168
        %v918 = vunpack.c.0.s8 %v917
        %v919 = vlaneseq
        %v920 = vshrl.u32 %v919, 7
        %v921 = vsub.s32 %v918, %v920
        %v922 = vrot.slane %v915, %v921
        %s924 = scalar_lea.vmem %s199, 19
        %925 = vst.msk [vmem:[%s924] ss:$8 sm:$0x3] %vm319, %v922
        %926 = vst.msk [vmem:[%s924] ss:$8 sm:$0x0] %vm319, %v922
        %v927 = vld [vmem:[#allocation2] sm:$0xff]
        %v928 = vld [vmem:[#allocation2 + $0x8] sm:$0xf]
        %931 = vrot.lane.b32.xlu0 %v927, 94
        %v932 = vpop.permute.xlu0 %931
        %933 = vrot.lane.b32.xlu0 %v928, 94
        %v934 = vpop.permute.xlu0 %933
        %v935 = vrot.slane %v932, 4
        %v936 = vrot.slane %v934, 4
        %v937 = vsel %vm281, %v935, %v936
        %vm938 = vcmask 769024
        %v939 = vsel %vm938, %v932, %v937
        %v941 = vmul.f32 %v218, %v939
        %v943 = vcombine.high %v941, %v941
        %v945 = vsel %vm281, %v941, 0.0
        %v946 = vrot.slane %v945, 4
        %v947 = vadd.f32 %v945, %v946
        %v948 = vrot.slane %v947, 2
        %v949 = vadd.f32 %v947, %v948
        %v950 = vrot.slane %v949, 1
        %v951 = vadd.f32 %v949, %v950
        %v952 = vsel %vm281, %v943, 0.0
        %v953 = vrot.slane %v952, 4
        %v954 = vadd.f32 %v952, %v953
        %v955 = vrot.slane %v954, 2
        %v956 = vadd.f32 %v954, %v955
        %v957 = vrot.slane %v956, 1
        %v958 = vadd.f32 %v956, %v957
        %v959 = vsel %vm262, %v951, 0.0
        %v960 = vsel %vm263, %v958, 0.0
        %v963 = vcombine.low %v959, %v960
        %v965 = vunpack.c.l.s4 1966171168
        %v966 = vunpack.c.0.s8 %v965
        %v967 = vlaneseq
        %v968 = vshrl.u32 %v967, 7
        %v969 = vsub.s32 %v966, %v968
        %v970 = vrot.slane %v963, %v969
        %v972 = vunpack.c.l.s4 1966171168
        %v973 = vunpack.c.0.s8 %v972
        %v974 = vlaneseq
        %v975 = vshrl.u32 %v974, 7
        %v976 = vsub.s32 %v973, %v975
        %v977 = vrot.slane %v970, %v976
        %s979 = scalar_lea.vmem %s199, 20
        %980 = vst.msk [vmem:[%s979] ss:$8 sm:$0x3] %vm319, %v977
        %981 = vst.msk [vmem:[%s979] ss:$8 sm:$0x0] %vm319, %v977
        %v982 = vld [vmem:[#allocation2] sm:$0xff]
        %v983 = vld [vmem:[#allocation2 + $0x8] sm:$0xf]
        %986 = vrot.lane.b32.xlu0 %v982, 93
        %v987 = vpop.permute.xlu0 %986
        %988 = vrot.lane.b32.xlu0 %v983, 93
        %v989 = vpop.permute.xlu0 %988
        %v990 = vrot.slane %v987, 4
        %v991 = vrot.slane %v989, 4
        %v992 = vsel %vm281, %v990, %v991
        %vm993 = vcmask 760832
        %v994 = vsel %vm993, %v987, %v992
        %v996 = vmul.f32 %v218, %v994
        %v998 = vcombine.high %v996, %v996
        %v1000 = vsel %vm281, %v996, 0.0
        %v1001 = vrot.slane %v1000, 4
        %v1002 = vadd.f32 %v1000, %v1001
        %v1003 = vrot.slane %v1002, 2
        %v1004 = vadd.f32 %v1002, %v1003
        %v1005 = vrot.slane %v1004, 1
        %v1006 = vadd.f32 %v1004, %v1005
        %v1007 = vsel %vm281, %v998, 0.0
        %v1008 = vrot.slane %v1007, 4
        %v1009 = vadd.f32 %v1007, %v1008
        %v1010 = vrot.slane %v1009, 2
        %v1011 = vadd.f32 %v1009, %v1010
        %v1012 = vrot.slane %v1011, 1
        %v1013 = vadd.f32 %v1011, %v1012
        %v1014 = vsel %vm268, %v1006, 0.0
        %v1015 = vsel %vm269, %v1013, 0.0
        %v1018 = vcombine.low %v1014, %v1015
        %v1020 = vunpack.c.l.s4 1966171168
        %v1021 = vunpack.c.0.s8 %v1020
        %v1022 = vlaneseq
        %v1023 = vshrl.u32 %v1022, 7
        %v1024 = vsub.s32 %v1021, %v1023
        %v1025 = vrot.slane %v1018, %v1024
        %v1027 = vunpack.c.l.s4 1966171168
        %v1028 = vunpack.c.0.s8 %v1027
        %v1029 = vlaneseq
        %v1030 = vshrl.u32 %v1029, 7
        %v1031 = vsub.s32 %v1028, %v1030
        %v1032 = vrot.slane %v1025, %v1031
        %s1034 = scalar_lea.vmem %s199, 21
        %1035 = vst.msk [vmem:[%s1034] ss:$8 sm:$0x3] %vm319, %v1032
        %1036 = vst.msk [vmem:[%s1034] ss:$8 sm:$0x0] %vm319, %v1032
        %v1037 = vld [vmem:[#allocation2] sm:$0xff]
        %v1038 = vld [vmem:[#allocation2 + $0x8] sm:$0xf]
        %1041 = vrot.lane.b32.xlu0 %v1037, 92
        %v1042 = vpop.permute.xlu0 %1041
        %1043 = vrot.lane.b32.xlu0 %v1038, 92
        %v1044 = vpop.permute.xlu0 %1043
        %v1045 = vrot.slane %v1042, 4
        %v1046 = vrot.slane %v1044, 4
        %v1047 = vsel %vm281, %v1045, %v1046
        %vm1048 = vcmask 752640
        %v1049 = vsel %vm1048, %v1042, %v1047
        %v1051 = vmul.f32 %v218, %v1049
        %v1053 = vcombine.high %v1051, %v1051
        %v1055 = vsel %vm281, %v1051, 0.0
        %v1056 = vrot.slane %v1055, 4
        %v1057 = vadd.f32 %v1055, %v1056
        %v1058 = vrot.slane %v1057, 2
        %v1059 = vadd.f32 %v1057, %v1058
        %v1060 = vrot.slane %v1059, 1
        %v1061 = vadd.f32 %v1059, %v1060
        %v1062 = vsel %vm281, %v1053, 0.0
        %v1063 = vrot.slane %v1062, 4
        %v1064 = vadd.f32 %v1062, %v1063
        %v1065 = vrot.slane %v1064, 2
        %v1066 = vadd.f32 %v1064, %v1065
        %v1067 = vrot.slane %v1066, 1
        %v1068 = vadd.f32 %v1066, %v1067
        %v1069 = vsel %vm274, %v1061, 0.0
        %v1070 = vsel %vm275, %v1068, 0.0
        %v1073 = vcombine.low %v1069, %v1070
        %v1075 = vunpack.c.l.s4 1966171168
        %v1076 = vunpack.c.0.s8 %v1075
        %v1077 = vlaneseq
        %v1078 = vshrl.u32 %v1077, 7
        %v1079 = vsub.s32 %v1076, %v1078
        %v1080 = vrot.slane %v1073, %v1079
        %v1082 = vunpack.c.l.s4 1966171168
        %v1083 = vunpack.c.0.s8 %v1082
        %v1084 = vlaneseq
        %v1085 = vshrl.u32 %v1084, 7
        %v1086 = vsub.s32 %v1083, %v1085
        %v1087 = vrot.slane %v1080, %v1086
        %s1089 = scalar_lea.vmem %s199, 22
        %1090 = vst.msk [vmem:[%s1089] ss:$8 sm:$0x3] %vm319, %v1087
        %1091 = vst.msk [vmem:[%s1089] ss:$8 sm:$0x0] %vm319, %v1087
        %v1092 = vld [vmem:[#allocation2] sm:$0xff]
        %v1093 = vld [vmem:[#allocation2 + $0x8] sm:$0xf]
        %1096 = vrot.lane.b32.xlu0 %v1092, 80
        %v1097 = vpop.permute.xlu0 %1096
        %1098 = vrot.lane.b32.xlu0 %v1093, 80
        %v1099 = vpop.permute.xlu0 %1098
        %v1100 = vrot.slane %v1097, 4
        %v1101 = vrot.slane %v1099, 4
        %v1102 = vsel %vm281, %v1100, %v1101
        %vm1103 = vcmask 654336
        %v1104 = vsel %vm1103, %v1097, %v1102
        %v1106 = vmul.f32 %v218, %v1104
        %v1108 = vcombine.high %v1106, %v1106
        %v1110 = vsel %vm281, %v1106, 0.0
        %v1111 = vrot.slane %v1110, 4
        %v1112 = vadd.f32 %v1110, %v1111
        %v1113 = vrot.slane %v1112, 2
        %v1114 = vadd.f32 %v1112, %v1113
        %v1115 = vrot.slane %v1114, 1
        %v1116 = vadd.f32 %v1114, %v1115
        %v1117 = vsel %vm281, %v1108, 0.0
        %v1118 = vrot.slane %v1117, 4
        %v1119 = vadd.f32 %v1117, %v1118
        %v1120 = vrot.slane %v1119, 2
        %v1121 = vadd.f32 %v1119, %v1120
        %v1122 = vrot.slane %v1121, 1
        %v1123 = vadd.f32 %v1121, %v1122
        %v1124 = vsel %vm250, %v1116, 0.0
        %v1125 = vsel %vm251, %v1123, 0.0
        %v1128 = vcombine.low %v1124, %v1125
        %v1130 = vunpack.c.l.s4 1966171168
        %v1131 = vunpack.c.0.s8 %v1130
        %v1132 = vlaneseq
        %v1133 = vshrl.u32 %v1132, 7
        %v1134 = vsub.s32 %v1131, %v1133
        %v1135 = vrot.slane %v1128, %v1134
        %v1137 = vunpack.c.l.s4 1966171168
        %v1138 = vunpack.c.0.s8 %v1137
        %v1139 = vlaneseq
        %v1140 = vshrl.u32 %v1139, 7
        %v1141 = vsub.s32 %v1138, %v1140
        %v1142 = vrot.slane %v1135, %v1141
        %s1144 = scalar_lea.vmem %s199, 23
        %1145 = vst.msk [vmem:[%s1144] ss:$8 sm:$0x3] %vm319, %v1142
        %1146 = vst.msk [vmem:[%s1144] ss:$8 sm:$0x0] %vm319, %v1142
        %v1147 = vld [vmem:[#allocation2] sm:$0xff]
        %v1148 = vld [vmem:[#allocation2 + $0x8] sm:$0xf]
        %1151 = vrot.lane.b32.xlu0 %v1147, 79
        %v1152 = vpop.permute.xlu0 %1151
        %1153 = vrot.lane.b32.xlu0 %v1148, 79
        %v1154 = vpop.permute.xlu0 %1153
        %v1155 = vrot.slane %v1152, 4
        %v1156 = vrot.slane %v1154, 4
        %v1157 = vsel %vm281, %v1155, %v1156
        %vm1158 = vcmask 646144
        %v1159 = vsel %vm1158, %v1152, %v1157
        %v1161 = vmul.f32 %v218, %v1159
        %v1163 = vcombine.high %v1161, %v1161
        %v1165 = vsel %vm281, %v1161, 0.0
        %v1166 = vrot.slane %v1165, 4
        %v1167 = vadd.f32 %v1165, %v1166
        %v1168 = vrot.slane %v1167, 2
        %v1169 = vadd.f32 %v1167, %v1168
        %v1170 = vrot.slane %v1169, 1
        %v1171 = vadd.f32 %v1169, %v1170
        %v1172 = vsel %vm281, %v1163, 0.0
        %v1173 = vrot.slane %v1172, 4
        %v1174 = vadd.f32 %v1172, %v1173
        %v1175 = vrot.slane %v1174, 2
        %v1176 = vadd.f32 %v1174, %v1175
        %v1177 = vrot.slane %v1176, 1
        %v1178 = vadd.f32 %v1176, %v1177
        %v1179 = vsel %vm256, %v1171, 0.0
        %v1180 = vsel %vm257, %v1178, 0.0
        %v1183 = vcombine.low %v1179, %v1180
        %v1185 = vunpack.c.l.s4 1966171168
        %v1186 = vunpack.c.0.s8 %v1185
        %v1187 = vlaneseq
        %v1188 = vshrl.u32 %v1187, 7
        %v1189 = vsub.s32 %v1186, %v1188
        %v1190 = vrot.slane %v1183, %v1189
        %v1192 = vunpack.c.l.s4 1966171168
        %v1193 = vunpack.c.0.s8 %v1192
        %v1194 = vlaneseq
        %v1195 = vshrl.u32 %v1194, 7
        %v1196 = vsub.s32 %v1193, %v1195
        %v1197 = vrot.slane %v1190, %v1196
        %s1199 = scalar_lea.vmem %s199, 32
        %1200 = vst.msk [vmem:[%s1199] ss:$8 sm:$0x3] %vm319, %v1197
        %1201 = vst.msk [vmem:[%s1199] ss:$8 sm:$0x0] %vm319, %v1197
        %v1202 = vld [vmem:[#allocation2] sm:$0xff]
        %v1203 = vld [vmem:[#allocation2 + $0x8] sm:$0xf]
        %1206 = vrot.lane.b32.xlu0 %v1202, 78
        %v1207 = vpop.permute.xlu0 %1206
        %1208 = vrot.lane.b32.xlu0 %v1203, 78
        %v1209 = vpop.permute.xlu0 %1208
        %v1210 = vrot.slane %v1207, 4
        %v1211 = vrot.slane %v1209, 4
        %v1212 = vsel %vm281, %v1210, %v1211
        %vm1213 = vcmask 637952
        %v1214 = vsel %vm1213, %v1207, %v1212
        %v1216 = vmul.f32 %v218, %v1214
        %v1218 = vcombine.high %v1216, %v1216
        %v1220 = vsel %vm281, %v1216, 0.0
        %v1221 = vrot.slane %v1220, 4
        %v1222 = vadd.f32 %v1220, %v1221
        %v1223 = vrot.slane %v1222, 2
        %v1224 = vadd.f32 %v1222, %v1223
        %v1225 = vrot.slane %v1224, 1
        %v1226 = vadd.f32 %v1224, %v1225
        %v1227 = vsel %vm281, %v1218, 0.0
        %v1228 = vrot.slane %v1227, 4
        %v1229 = vadd.f32 %v1227, %v1228
        %v1230 = vrot.slane %v1229, 2
        %v1231 = vadd.f32 %v1229, %v1230
        %v1232 = vrot.slane %v1231, 1
        %v1233 = vadd.f32 %v1231, %v1232
        %v1234 = vsel %vm262, %v1226, 0.0
        %v1235 = vsel %vm263, %v1233, 0.0
        %v1238 = vcombine.low %v1234, %v1235
        %v1240 = vunpack.c.l.s4 1966171168
        %v1241 = vunpack.c.0.s8 %v1240
        %v1242 = vlaneseq
        %v1243 = vshrl.u32 %v1242, 7
        %v1244 = vsub.s32 %v1241, %v1243
        %v1245 = vrot.slane %v1238, %v1244
        %v1247 = vunpack.c.l.s4 1966171168
        %v1248 = vunpack.c.0.s8 %v1247
        %v1249 = vlaneseq
        %v1250 = vshrl.u32 %v1249, 7
        %v1251 = vsub.s32 %v1248, %v1250
        %v1252 = vrot.slane %v1245, %v1251
        %s1254 = scalar_lea.vmem %s199, 33
        %1255 = vst.msk [vmem:[%s1254] ss:$8 sm:$0x3] %vm319, %v1252
        %1256 = vst.msk [vmem:[%s1254] ss:$8 sm:$0x0] %vm319, %v1252
        %v1257 = vld [vmem:[#allocation2] sm:$0xff]
        %v1258 = vld [vmem:[#allocation2 + $0x8] sm:$0xf]
        %1261 = vrot.lane.b32.xlu0 %v1257, 77
        %v1262 = vpop.permute.xlu0 %1261
        %1263 = vrot.lane.b32.xlu0 %v1258, 77
        %v1264 = vpop.permute.xlu0 %1263
        %v1265 = vrot.slane %v1262, 4
        %v1266 = vrot.slane %v1264, 4
        %v1267 = vsel %vm281, %v1265, %v1266
        %vm1268 = vcmask 629760
        %v1269 = vsel %vm1268, %v1262, %v1267
        %v1271 = vmul.f32 %v218, %v1269
        %v1273 = vcombine.high %v1271, %v1271
        %v1275 = vsel %vm281, %v1271, 0.0
        %v1276 = vrot.slane %v1275, 4
        %v1277 = vadd.f32 %v1275, %v1276
        %v1278 = vrot.slane %v1277, 2
        %v1279 = vadd.f32 %v1277, %v1278
        %v1280 = vrot.slane %v1279, 1
        %v1281 = vadd.f32 %v1279, %v1280
        %v1282 = vsel %vm281, %v1273, 0.0
        %v1283 = vrot.slane %v1282, 4
        %v1284 = vadd.f32 %v1282, %v1283
        %v1285 = vrot.slane %v1284, 2
        %v1286 = vadd.f32 %v1284, %v1285
        %v1287 = vrot.slane %v1286, 1
        %v1288 = vadd.f32 %v1286, %v1287
        %v1289 = vsel %vm268, %v1281, 0.0
        %v1290 = vsel %vm269, %v1288, 0.0
        %v1293 = vcombine.low %v1289, %v1290
        %v1295 = vunpack.c.l.s4 1966171168
        %v1296 = vunpack.c.0.s8 %v1295
        %v1297 = vlaneseq
        %v1298 = vshrl.u32 %v1297, 7
        %v1299 = vsub.s32 %v1296, %v1298
        %v1300 = vrot.slane %v1293, %v1299
        %v1302 = vunpack.c.l.s4 1966171168
        %v1303 = vunpack.c.0.s8 %v1302
        %v1304 = vlaneseq
        %v1305 = vshrl.u32 %v1304, 7
        %v1306 = vsub.s32 %v1303, %v1305
        %v1307 = vrot.slane %v1300, %v1306
        %s1309 = scalar_lea.vmem %s199, 34
        %1310 = vst.msk [vmem:[%s1309] ss:$8 sm:$0x3] %vm319, %v1307
        %1311 = vst.msk [vmem:[%s1309] ss:$8 sm:$0x0] %vm319, %v1307
        %v1312 = vld [vmem:[#allocation2] sm:$0xff]
        %v1313 = vld [vmem:[#allocation2 + $0x8] sm:$0xf]
        %1316 = vrot.lane.b32.xlu0 %v1312, 76
        %v1317 = vpop.permute.xlu0 %1316
        %1318 = vrot.lane.b32.xlu0 %v1313, 76
        %v1319 = vpop.permute.xlu0 %1318
        %v1320 = vrot.slane %v1317, 4
        %v1321 = vrot.slane %v1319, 4
        %v1322 = vsel %vm281, %v1320, %v1321
        %vm1323 = vcmask 621568
        %v1324 = vsel %vm1323, %v1317, %v1322
        %v1326 = vmul.f32 %v218, %v1324
        %v1328 = vcombine.high %v1326, %v1326
        %v1330 = vsel %vm281, %v1326, 0.0
        %v1331 = vrot.slane %v1330, 4
        %v1332 = vadd.f32 %v1330, %v1331
        %v1333 = vrot.slane %v1332, 2
        %v1334 = vadd.f32 %v1332, %v1333
        %v1335 = vrot.slane %v1334, 1
        %v1336 = vadd.f32 %v1334, %v1335
        %v1337 = vsel %vm281, %v1328, 0.0
        %v1338 = vrot.slane %v1337, 4
        %v1339 = vadd.f32 %v1337, %v1338
        %v1340 = vrot.slane %v1339, 2
        %v1341 = vadd.f32 %v1339, %v1340
        %v1342 = vrot.slane %v1341, 1
        %v1343 = vadd.f32 %v1341, %v1342
        %v1344 = vsel %vm274, %v1336, 0.0
        %v1345 = vsel %vm275, %v1343, 0.0
        %v1348 = vcombine.low %v1344, %v1345
        %v1350 = vunpack.c.l.s4 1966171168
        %v1351 = vunpack.c.0.s8 %v1350
        %v1352 = vlaneseq
        %v1353 = vshrl.u32 %v1352, 7
        %v1354 = vsub.s32 %v1351, %v1353
        %v1355 = vrot.slane %v1348, %v1354
        %v1357 = vunpack.c.l.s4 1966171168
        %v1358 = vunpack.c.0.s8 %v1357
        %v1359 = vlaneseq
        %v1360 = vshrl.u32 %v1359, 7
        %v1361 = vsub.s32 %v1358, %v1360
        %v1362 = vrot.slane %v1355, %v1361
        %s1364 = scalar_lea.vmem %s199, 35
        %1365 = vst.msk [vmem:[%s1364] ss:$8 sm:$0x3] %vm319, %v1362
        %1366 = vst.msk [vmem:[%s1364] ss:$8 sm:$0x0] %vm319, %v1362
        %v1367 = vld [vmem:[#allocation2] sm:$0xff]
        %v1368 = vld [vmem:[#allocation2 + $0x8] sm:$0xf]
        %1371 = vrot.lane.b32.xlu0 %v1367, 64
        %v1372 = vpop.permute.xlu0 %1371
        %1373 = vrot.lane.b32.xlu0 %v1368, 64
        %v1374 = vpop.permute.xlu0 %1373
        %v1375 = vrot.slane %v1372, 4
        %v1376 = vrot.slane %v1374, 4
        %v1377 = vsel %vm281, %v1375, %v1376
        %vm1378 = vcmask 523264
        %v1379 = vsel %vm1378, %v1372, %v1377
        %v1381 = vmul.f32 %v218, %v1379
        %v1383 = vcombine.high %v1381, %v1381
        %v1385 = vsel %vm281, %v1381, 0.0
        %v1386 = vrot.slane %v1385, 4
        %v1387 = vadd.f32 %v1385, %v1386
        %v1388 = vrot.slane %v1387, 2
        %v1389 = vadd.f32 %v1387, %v1388
        %v1390 = vrot.slane %v1389, 1
        %v1391 = vadd.f32 %v1389, %v1390
        %v1392 = vsel %vm281, %v1383, 0.0
        %v1393 = vrot.slane %v1392, 4
        %v1394 = vadd.f32 %v1392, %v1393
        %v1395 = vrot.slane %v1394, 2
        %v1396 = vadd.f32 %v1394, %v1395
        %v1397 = vrot.slane %v1396, 1
        %v1398 = vadd.f32 %v1396, %v1397
        %v1399 = vsel %vm250, %v1391, 0.0
        %v1400 = vsel %vm251, %v1398, 0.0
        %v1403 = vcombine.low %v1399, %v1400
        %v1405 = vunpack.c.l.s4 1966171168
        %v1406 = vunpack.c.0.s8 %v1405
        %v1407 = vlaneseq
        %v1408 = vshrl.u32 %v1407, 7
        %v1409 = vsub.s32 %v1406, %v1408
        %v1410 = vrot.slane %v1403, %v1409
        %v1412 = vunpack.c.l.s4 1966171168
        %v1413 = vunpack.c.0.s8 %v1412
        %v1414 = vlaneseq
        %v1415 = vshrl.u32 %v1414, 7
        %v1416 = vsub.s32 %v1413, %v1415
        %v1417 = vrot.slane %v1410, %v1416
        %s1419 = scalar_lea.vmem %s199, 36
        %1420 = vst.msk [vmem:[%s1419] ss:$8 sm:$0x3] %vm319, %v1417
        %1421 = vst.msk [vmem:[%s1419] ss:$8 sm:$0x0] %vm319, %v1417
        %v1422 = vld [vmem:[#allocation2] sm:$0xff]
        %v1423 = vld [vmem:[#allocation2 + $0x8] sm:$0xf]
        %1426 = vrot.lane.b32.xlu0 %v1422, 63
        %v1427 = vpop.permute.xlu0 %1426
        %1428 = vrot.lane.b32.xlu0 %v1423, 63
        %v1429 = vpop.permute.xlu0 %1428
        %v1430 = vrot.slane %v1427, 4
        %v1431 = vrot.slane %v1429, 4
        %v1432 = vsel %vm281, %v1430, %v1431
        %vm1433 = vcmask 515072
        %v1434 = vsel %vm1433, %v1427, %v1432
        %v1436 = vmul.f32 %v218, %v1434
        %v1438 = vcombine.high %v1436, %v1436
        %v1440 = vsel %vm281, %v1436, 0.0
        %v1441 = vrot.slane %v1440, 4
        %v1442 = vadd.f32 %v1440, %v1441
        %v1443 = vrot.slane %v1442, 2
        %v1444 = vadd.f32 %v1442, %v1443
        %v1445 = vrot.slane %v1444, 1
        %v1446 = vadd.f32 %v1444, %v1445
        %v1447 = vsel %vm281, %v1438, 0.0
        %v1448 = vrot.slane %v1447, 4
        %v1449 = vadd.f32 %v1447, %v1448
        %v1450 = vrot.slane %v1449, 2
        %v1451 = vadd.f32 %v1449, %v1450
        %v1452 = vrot.slane %v1451, 1
        %v1453 = vadd.f32 %v1451, %v1452
        %v1454 = vsel %vm256, %v1446, 0.0
        %v1455 = vsel %vm257, %v1453, 0.0
        %v1458 = vcombine.low %v1454, %v1455
        %v1460 = vunpack.c.l.s4 1966171168
        %v1461 = vunpack.c.0.s8 %v1460
        %v1462 = vlaneseq
        %v1463 = vshrl.u32 %v1462, 7
        %v1464 = vsub.s32 %v1461, %v1463
        %v1465 = vrot.slane %v1458, %v1464
        %v1467 = vunpack.c.l.s4 1966171168
        %v1468 = vunpack.c.0.s8 %v1467
        %v1469 = vlaneseq
        %v1470 = vshrl.u32 %v1469, 7
        %v1471 = vsub.s32 %v1468, %v1470
        %v1472 = vrot.slane %v1465, %v1471
        %s1474 = scalar_lea.vmem %s199, 37
        %1475 = vst.msk [vmem:[%s1474] ss:$8 sm:$0x3] %vm319, %v1472
        %1476 = vst.msk [vmem:[%s1474] ss:$8 sm:$0x0] %vm319, %v1472
        %v1477 = vld [vmem:[#allocation2] sm:$0xff]
        %v1478 = vld [vmem:[#allocation2 + $0x8] sm:$0xf]
        %1481 = vrot.lane.b32.xlu0 %v1477, 62
        %v1482 = vpop.permute.xlu0 %1481
        %1483 = vrot.lane.b32.xlu0 %v1478, 62
        %v1484 = vpop.permute.xlu0 %1483
        %v1485 = vrot.slane %v1482, 4
        %v1486 = vrot.slane %v1484, 4
        %v1487 = vsel %vm281, %v1485, %v1486
        %vm1488 = vcmask 506880
        %v1489 = vsel %vm1488, %v1482, %v1487
        %v1491 = vmul.f32 %v218, %v1489
        %v1493 = vcombine.high %v1491, %v1491
        %v1495 = vsel %vm281, %v1491, 0.0
        %v1496 = vrot.slane %v1495, 4
        %v1497 = vadd.f32 %v1495, %v1496
        %v1498 = vrot.slane %v1497, 2
        %v1499 = vadd.f32 %v1497, %v1498
        %v1500 = vrot.slane %v1499, 1
        %v1501 = vadd.f32 %v1499, %v1500
        %v1502 = vsel %vm281, %v1493, 0.0
        %v1503 = vrot.slane %v1502, 4
        %v1504 = vadd.f32 %v1502, %v1503
        %v1505 = vrot.slane %v1504, 2
        %v1506 = vadd.f32 %v1504, %v1505
        %v1507 = vrot.slane %v1506, 1
        %v1508 = vadd.f32 %v1506, %v1507
        %v1509 = vsel %vm262, %v1501, 0.0
        %v1510 = vsel %vm263, %v1508, 0.0
        %v1513 = vcombine.low %v1509, %v1510
        %v1515 = vunpack.c.l.s4 1966171168
        %v1516 = vunpack.c.0.s8 %v1515
        %v1517 = vlaneseq
        %v1518 = vshrl.u32 %v1517, 7
        %v1519 = vsub.s32 %v1516, %v1518
        %v1520 = vrot.slane %v1513, %v1519
        %v1522 = vunpack.c.l.s4 1966171168
        %v1523 = vunpack.c.0.s8 %v1522
        %v1524 = vlaneseq
        %v1525 = vshrl.u32 %v1524, 7
        %v1526 = vsub.s32 %v1523, %v1525
        %v1527 = vrot.slane %v1520, %v1526
        %s1529 = scalar_lea.vmem %s199, 38
        %1530 = vst.msk [vmem:[%s1529] ss:$8 sm:$0x3] %vm319, %v1527
        %1531 = vst.msk [vmem:[%s1529] ss:$8 sm:$0x0] %vm319, %v1527
        %v1532 = vld [vmem:[#allocation2] sm:$0xff]
        %v1533 = vld [vmem:[#allocation2 + $0x8] sm:$0xf]
        %1536 = vrot.lane.b32.xlu0 %v1532, 61
        %v1537 = vpop.permute.xlu0 %1536
        %1538 = vrot.lane.b32.xlu0 %v1533, 61
        %v1539 = vpop.permute.xlu0 %1538
        %v1540 = vrot.slane %v1537, 4
        %v1541 = vrot.slane %v1539, 4
        %v1542 = vsel %vm281, %v1540, %v1541
        %vm1543 = vcmask 498688
        %v1544 = vsel %vm1543, %v1537, %v1542
        %v1546 = vmul.f32 %v218, %v1544
        %v1548 = vcombine.high %v1546, %v1546
        %v1550 = vsel %vm281, %v1546, 0.0
        %v1551 = vrot.slane %v1550, 4
        %v1552 = vadd.f32 %v1550, %v1551
        %v1553 = vrot.slane %v1552, 2
        %v1554 = vadd.f32 %v1552, %v1553
        %v1555 = vrot.slane %v1554, 1
        %v1556 = vadd.f32 %v1554, %v1555
        %v1557 = vsel %vm281, %v1548, 0.0
        %v1558 = vrot.slane %v1557, 4
        %v1559 = vadd.f32 %v1557, %v1558
        %v1560 = vrot.slane %v1559, 2
        %v1561 = vadd.f32 %v1559, %v1560
        %v1562 = vrot.slane %v1561, 1
        %v1563 = vadd.f32 %v1561, %v1562
        %v1564 = vsel %vm268, %v1556, 0.0
        %v1565 = vsel %vm269, %v1563, 0.0
        %v1568 = vcombine.low %v1564, %v1565
        %v1570 = vunpack.c.l.s4 1966171168
        %v1571 = vunpack.c.0.s8 %v1570
        %v1572 = vlaneseq
        %v1573 = vshrl.u32 %v1572, 7
        %v1574 = vsub.s32 %v1571, %v1573
        %v1575 = vrot.slane %v1568, %v1574
        %v1577 = vunpack.c.l.s4 1966171168
        %v1578 = vunpack.c.0.s8 %v1577
        %v1579 = vlaneseq
        %v1580 = vshrl.u32 %v1579, 7
        %v1581 = vsub.s32 %v1578, %v1580
        %v1582 = vrot.slane %v1575, %v1581
        %s1584 = scalar_lea.vmem %s199, 39
        %1585 = vst.msk [vmem:[%s1584] ss:$8 sm:$0x3] %vm319, %v1582
        %1586 = vst.msk [vmem:[%s1584] ss:$8 sm:$0x0] %vm319, %v1582
        %v1587 = vld [vmem:[#allocation2] sm:$0xff]
        %v1588 = vld [vmem:[#allocation2 + $0x8] sm:$0xf]
        %1591 = vrot.lane.b32.xlu0 %v1587, 60
        %v1592 = vpop.permute.xlu0 %1591
        %1593 = vrot.lane.b32.xlu0 %v1588, 60
        %v1594 = vpop.permute.xlu0 %1593
        %v1595 = vrot.slane %v1592, 4
        %v1596 = vrot.slane %v1594, 4
        %v1597 = vsel %vm281, %v1595, %v1596
        %vm1598 = vcmask 490496
        %v1599 = vsel %vm1598, %v1592, %v1597
        %v1601 = vmul.f32 %v218, %v1599
        %v1603 = vcombine.high %v1601, %v1601
        %v1605 = vsel %vm281, %v1601, 0.0
        %v1606 = vrot.slane %v1605, 4
        %v1607 = vadd.f32 %v1605, %v1606
        %v1608 = vrot.slane %v1607, 2
        %v1609 = vadd.f32 %v1607, %v1608
        %v1610 = vrot.slane %v1609, 1
        %v1611 = vadd.f32 %v1609, %v1610
        %v1612 = vsel %vm281, %v1603, 0.0
        %v1613 = vrot.slane %v1612, 4
        %v1614 = vadd.f32 %v1612, %v1613
        %v1615 = vrot.slane %v1614, 2
        %v1616 = vadd.f32 %v1614, %v1615
        %v1617 = vrot.slane %v1616, 1
        %v1618 = vadd.f32 %v1616, %v1617
        %v1619 = vsel %vm274, %v1611, 0.0
        %v1620 = vsel %vm275, %v1618, 0.0
        %v1623 = vcombine.low %v1619, %v1620
        %v1625 = vunpack.c.l.s4 1966171168
        %v1626 = vunpack.c.0.s8 %v1625
        %v1627 = vlaneseq
        %v1628 = vshrl.u32 %v1627, 7
        %v1629 = vsub.s32 %v1626, %v1628
        %v1630 = vrot.slane %v1623, %v1629
        %v1632 = vunpack.c.l.s4 1966171168
        %v1633 = vunpack.c.0.s8 %v1632
        %v1634 = vlaneseq
        %v1635 = vshrl.u32 %v1634, 7
        %v1636 = vsub.s32 %v1633, %v1635
        %v1637 = vrot.slane %v1630, %v1636
        %s1639 = scalar_lea.vmem %s199, 48
        %1640 = vst.msk [vmem:[%s1639] ss:$8 sm:$0x3] %vm319, %v1637
        %1641 = vst.msk [vmem:[%s1639] ss:$8 sm:$0x0] %vm319, %v1637
        %p1642 = scmp.lt.s32.totalorder %s19, 1
        %s1643 = scalar_select %p1642, %s19, 1
        %s1644 = smul.addr %s1643, 8
        %s1645 = smul.addr %s1644, 8
        %s1646 = scalar_lea.vmem %s2, %s1645
        // Predicated region
        $region37: #{tpu_custom_call.1} parent=27 // pred_check
          %p1647 = pneg %p89
        $region38: #{tpu_custom_call.1} parent=27 // pred_check_branch
          %1649 = sbr.rel (%p1647) target = $region40
        $region39: #{tpu_custom_call.1} parent=27 // pred_region
          _
        $region40: #{tpu_custom_call.1} parent=27 // pred_fallthru
          _
      $region28: #{tpu_custom_call.1} parent=5 // pred_fallthru
        _
      %p1650 = scmp.le.s32.totalorder 2, %s14
      // Predicated region
      $region41: #{tpu_custom_call.1} parent=5 // pred_check
        %p1651 = pneg %p1650
      $region42: #{tpu_custom_call.1} parent=5 // pred_check_branch
        %1653 = sbr.rel (%p1651) target = $region44
      $region43: #{tpu_custom_call.1} parent=5 // pred_region
        %s1654 = ssub.s32 %s14, 2
        // Predicated region
        $region45: #{tpu_custom_call.1} parent=43 // pred_check
          %p1655 = pneg %p95
        $region46: #{tpu_custom_call.1} parent=43 // pred_check_branch
          %1657 = sbr.rel (%p1655) target = $region48
        $region47: #{tpu_custom_call.1} parent=43 // pred_region
          %p1658 = scmp.lt.s32.totalorder %s20, 1
          %s1659 = scalar_select %p1658, %s20, 1
          %s1660 = smul.addr %s1659, 8
          %s1661 = smul.addr %s1660, 8
          %s1662 = scalar_lea.vmem %s2, %s1661
        $region48: #{tpu_custom_call.1} parent=43 // pred_fallthru
          _
      $region44: #{tpu_custom_call.1} parent=5 // pred_fallthru
        _
    $region6: #{tpu_custom_call.1} parent=1 // loop_footer
      %s18 = sadd.s32 1, %s14
    $region7: #{tpu_custom_call.1} parent=1 // loop_footer_branch
      %13 = sbr.rel target = $region3
    $region8: #{tpu_custom_call.1} parent=1 // loop_exit
      _
    %1663 = vsyncpa [#allocation4], 1
    %s1664 = scalar_lea.sflag [#allocation4], 1
    %1665 = vsyncpa %s1664, 1
    %1666 = vsyncpa [#allocation6], 1
    %s1667 = scalar_lea.sflag [#allocation6], 1
    %1668 = vsyncpa %s1667, 1

</llo_original>
